<compile_context>
chip_gen: v5e
topology: v5e:2x2
jax: 0.10.0
libtpu: 0.0.40
codegen_flags: <defaults>
</compile_context>

<pallas_src>
import math
from functools import partial

import jax
import jax.numpy as jnp
from jax.experimental import pallas as pl
from jax.experimental.pallas import tpu as pltpu


# ----------------------------------------------------------------------------
# helpers
# ----------------------------------------------------------------------------
def _pick_tile(dim, desired, align):
    """Largest multiple of `align` that divides `dim` and is <= desired;
    falls back to the full dim (legal full-extent block) otherwise."""
    if dim <= desired:
        return dim
    t = (desired // align) * align
    while t >= align:
        if dim % t == 0:
            return t
        t -= align
    return dim


def rotary_tables(seq_len, head_dim, base=10000.0):
    """HF-Llama rotary tables: cos/sin of shape [T, D] (halves duplicated)."""
    inv_freq = 1.0 / (base ** (jnp.arange(0, head_dim, 2, dtype=jnp.float32) / head_dim))
    t = jnp.arange(seq_len, dtype=jnp.float32)
    freqs = jnp.einsum("t,f->tf", t, inv_freq)              # [T, D/2]
    emb = jnp.concatenate([freqs, freqs], axis=-1)           # [T, D]
    return jnp.cos(emb), jnp.sin(emb)


# ----------------------------------------------------------------------------
# Kernel 1: fused qkv projection with RoPE + q-scale in the writeback epilogue
# ----------------------------------------------------------------------------
def _qkv_rope_kernel(x_ref, w_ref, cos_ref, sin_ref, o_ref, acc_ref, *,
                     num_heads, q_scale):
    """Tiled [tm,tk]@[tk,D] matmul; at the last k step the f32 accumulator is
    RoPE'd (q/k heads), the q heads are pre-scaled by 1/sqrt(D), and the tile
    is written out in bf16.  Grid = (M/tm, 3*NH, K/tk), k innermost."""
    j = pl.program_id(1)          # which head-sized column block of [q|k|v]

    @pl.when(pl.program_id(2) == 0)
    def _():
        acc_ref[...] = jnp.zeros_like(acc_ref)

    acc_ref[...] += jnp.dot(x_ref[...], w_ref[...],
                            preferred_element_type=jnp.float32)

    @pl.when(pl.program_id(2) == pl.num_programs(2) - 1)
    def _():
        D = acc_ref.shape[1]
        half = D // 2
        r = acc_ref[...]
        r1, r2 = r[:, :half], r[:, half:]
        # cos/sin halves are identical by construction, one half is enough.
        c = cos_ref[:, :half]
        s = sin_ref[:, :half]

        def write_rope(scale):
            # rotate_half(x) = [-x2, x1]; the swap is done through addressing
            # (two half-width stores), no cross-lane op needed.
            o_ref[:, :half] = ((r1 * c - r2 * s) * scale).astype(o_ref.dtype)
            o_ref[:, half:] = ((r2 * c + r1 * s) * scale).astype(o_ref.dtype)

        @pl.when(j < num_heads)                                   # q heads
        def _():
            write_rope(q_scale)

        @pl.when(jnp.logical_and(j >= num_heads, j < 2 * num_heads))  # k heads
        def _():
            write_rope(1.0)

        @pl.when(j >= 2 * num_heads)                              # v heads
        def _():
            o_ref[...] = r.astype(o_ref.dtype)


def qkv_proj_rope(x, w, cos, sin, num_heads, seq_len,
                  out_dtype=jnp.bfloat16, tm=256, tk=1024):
    """x: [B*T, H] bf16, w: [H, 3H] bf16, cos/sin: [T, D] f32.
    Returns fused qkv [B*T, 3H] bf16 with RoPE applied to q/k and q pre-scaled
    by 1/sqrt(D) (position_ids = arange(T) per batch row-block)."""
    M, K = x.shape
    K2, N = w.shape
    assert K == K2
    T = seq_len
    D = N // (3 * num_heads)
    assert 3 * num_heads * D == N
    assert D % 128 == 0, "head_dim must be a multiple of 128 (lane width)"
    assert M % T == 0

    tm = _pick_tile(T, tm, 16)     # row tile divides T -> contiguous positions
    tk = _pick_tile(K, tk, 128)
    grid = (M // tm, 3 * num_heads, K // tk)
    n_pos = T // tm                # number of position blocks of cos/sin

    flops = 2 * M * N * K
    bytes_accessed = (M * K * x.dtype.itemsize + K * N * w.dtype.itemsize
                      + M * N * jnp.dtype(out_dtype).itemsize + 2 * T * D * 4)

    return pl.pallas_call(
        partial(_qkv_rope_kernel, num_heads=num_heads,
                q_scale=1.0 / math.sqrt(D)),
        out_shape=jax.ShapeDtypeStruct((M, N), out_dtype),
        grid=grid,
        in_specs=[
            pl.BlockSpec((tm, tk), lambda i, j, k: (i, k)),
            pl.BlockSpec((tk, D), lambda i, j, k: (k, j)),
            pl.BlockSpec((tm, D), lambda i, j, k: (i % n_pos, 0)),
            pl.BlockSpec((tm, D), lambda i, j, k: (i % n_pos, 0)),
        ],
        out_specs=pl.BlockSpec((tm, D), lambda i, j, k: (i, j)),
        scratch_shapes=[pltpu.VMEM((tm, D), jnp.float32)],
        compiler_params=pltpu.CompilerParams(
            dimension_semantics=("parallel", "parallel", "arbitrary")),
        cost_estimate=pl.CostEstimate(flops=flops, transcendentals=0,
                                      bytes_accessed=bytes_accessed),
    )(x, w, cos, sin)


# ----------------------------------------------------------------------------
# Kernel 2: plain tiled dense projection (o_proj), bf16 MXU + f32 accumulator
# ----------------------------------------------------------------------------
def _linear_kernel(x_ref, w_ref, o_ref, acc_ref):
    @pl.when(pl.program_id(2) == 0)
    def _():
        acc_ref[...] = jnp.zeros_like(acc_ref)

    acc_ref[...] += jnp.dot(x_ref[...], w_ref[...],
                            preferred_element_type=jnp.float32)

    @pl.when(pl.program_id(2) == pl.num_programs(2) - 1)
    def _():
        o_ref[...] = acc_ref[...].astype(o_ref.dtype)


def linear(x, w, out_dtype=jnp.float32, tm=256, tn=256, tk=1024):
    """x: [M, K] (bf16), w: [K, N] (bf16) -> [M, N] (out_dtype)."""
    M, K = x.shape
    K2, N = w.shape
    assert K == K2
    tm = _pick_tile(M, tm, 16)
    tn = _pick_tile(N, tn, 128)
    tk = _pick_tile(K, tk, 128)
    grid = (M // tm, N // tn, K // tk)

    flops = 2 * M * N * K
    bytes_accessed = (M * K * x.dtype.itemsize + K * N * w.dtype.itemsize
                      + M * N * jnp.dtype(out_dtype).itemsize)

    return pl.pallas_call(
        _linear_kernel,
        out_shape=jax.ShapeDtypeStruct((M, N), out_dtype),
        grid=grid,
        in_specs=[pl.BlockSpec((tm, tk), lambda i, j, k: (i, k)),
                  pl.BlockSpec((tk, tn), lambda i, j, k: (k, j))],
        out_specs=pl.BlockSpec((tm, tn), lambda i, j, k: (i, j)),
        scratch_shapes=[pltpu.VMEM((tm, tn), jnp.float32)],
        compiler_params=pltpu.CompilerParams(
            dimension_semantics=("parallel", "parallel", "arbitrary")),
        cost_estimate=pl.CostEstimate(flops=flops, transcendentals=0,
                                      bytes_accessed=bytes_accessed),
    )(x, w)


# ----------------------------------------------------------------------------
# Kernel 3: flash-style causal attention (q already RoPE'd + pre-scaled)
# ----------------------------------------------------------------------------
def _attn_kernel(q_ref, k_ref, v_ref, o_ref, m_sc, l_sc, acc_sc):
    tq, D = q_ref.shape[1], q_ref.shape[2]
    tkv = k_ref.shape[1]
    qi = pl.program_id(2)
    ki = pl.program_id(3)

    @pl.when(ki == 0)
    def _():
        m_sc[...] = jnp.full_like(m_sc, -1e30)
        l_sc[...] = jnp.zeros_like(l_sc)
        acc_sc[...] = jnp.zeros_like(acc_sc)

    def scores():
        # q is already scaled by 1/sqrt(D) in the projection epilogue.
        return jax.lax.dot_general(
            q_ref[0], k_ref[0], (((1,), (1,)), ((), ())),
            preferred_element_type=jnp.float32)

    def online_update(s):
        m_prev = m_sc[...]
        m_new = jnp.maximum(m_prev, jnp.max(s, axis=-1, keepdims=True))
        alpha = jnp.exp(m_prev - m_new)
        p = jnp.exp(s - m_new)
        l_sc[...] = alpha * l_sc[...] + jnp.sum(p, axis=-1, keepdims=True)
        acc_sc[...] = alpha * acc_sc[...] + jnp.dot(
            p.astype(jnp.bfloat16), v_ref[0],
            preferred_element_type=jnp.float32)
        m_sc[...] = m_new

    # Tile classification relative to the causal diagonal.
    below_diag = (ki + 1) * tkv <= qi * tq + 1     # fully visible: no mask
    not_future = ki * tkv < (qi + 1) * tq          # at least partly visible
    on_diag = jnp.logical_and(not_future, jnp.logical_not(below_diag))

    @pl.when(below_diag)        # mask-free fast path
    def _():
        online_update(scores())

    @pl.when(on_diag)           # diagonal tiles: build the causal mask
    def _():
        s = scores()
        row = qi * tq + jax.lax.broadcasted_iota(jnp.int32, (tq, tkv), 0)
        col = ki * tkv + jax.lax.broadcasted_iota(jnp.int32, (tq, tkv), 1)
        online_update(jnp.where(row >= col, s, -1e30))

    @pl.when(ki == pl.num_programs(3) - 1)
    def _():
        o_ref[0] = (acc_sc[...] / l_sc[...]).astype(o_ref.dtype)


def attention(qkv, num_heads, tq=256, tkv=256, out_dtype=jnp.bfloat16):
    """qkv: [B, T, 3H] bf16 (RoPE'd, q pre-scaled). Returns [B, T, H]."""
    B, T, H3 = qkv.shape
    H = H3 // 3
    NH = num_heads
    D = H // NH
    assert D % 128 == 0
    # NOTE: on v5e tkv=128 already saturates its 4x128^2 MXU; 256 targets
    # v6e/v7x (2x256^2) and also halves kv re-reads / per-step overhead.
    tq = _pick_tile(T, tq, 16)
    tkv = _pick_tile(T, tkv, 16)
    grid = (B, NH, T // tq, T // tkv)

    def kv_block(ki, qi):
        # Clamp to the last causally-visible kv tile so skipped (future) grid
        # steps revisit an already-resident block and issue no new DMA.
        return jnp.minimum(ki, ((qi + 1) * tq - 1) // tkv)

    q_spec = pl.BlockSpec((1, tq, D), lambda b, h, qi, ki: (b, qi, h))
    k_spec = pl.BlockSpec((1, tkv, D),
                          lambda b, h, qi, ki: (b, kv_block(ki, qi), NH + h))
    v_spec = pl.BlockSpec((1, tkv, D),
                          lambda b, h, qi, ki: (b, kv_block(ki, qi), 2 * NH + h))
    out_spec = pl.BlockSpec((1, tq, D), lambda b, h, qi, ki: (b, qi, h))

    flops = 2 * B * NH * T * T * D            # causal ~half of QK^T + PV
    transcendentals = B * NH * T * T // 2
    bytes_accessed = (3 * B * T * H * qkv.dtype.itemsize
                      + B * T * H * jnp.dtype(out_dtype).itemsize)

    return pl.pallas_call(
        _attn_kernel,
        out_shape=jax.ShapeDtypeStruct((B, T, H), out_dtype),
        grid=grid,
        in_specs=[q_spec, k_spec, v_spec],
        out_specs=out_spec,
        scratch_shapes=[
            pltpu.VMEM((tq, 1), jnp.float32),     # running max m
            pltpu.VMEM((tq, 1), jnp.float32),     # running denom l
            pltpu.VMEM((tq, D), jnp.float32),     # output accumulator
        ],
        compiler_params=pltpu.CompilerParams(
            dimension_semantics=("parallel", "parallel", "parallel",
                                 "arbitrary")),
        cost_estimate=pl.CostEstimate(flops=flops,
                                      transcendentals=transcendentals,
                                      bytes_accessed=bytes_accessed),
    )(qkv, qkv, qkv)


# ----------------------------------------------------------------------------
# Module wrapper: QuantLlamaAttention.forward
# ----------------------------------------------------------------------------
def quant_llama_attention(hidden_states, w_qkv, w_o, num_heads):
    """hidden_states: [B, T, H]; w_qkv: [H, 3H]; w_o: [H, H] (pref. bf16)."""
    B, T, H = hidden_states.shape
    D = H // num_heads
    assert D * num_heads == H

    # Weights should be stored pre-cast to bf16; only cast if needed.
    w_qkv = w_qkv if w_qkv.dtype == jnp.bfloat16 else w_qkv.astype(jnp.bfloat16)
    w_o = w_o if w_o.dtype == jnp.bfloat16 else w_o.astype(jnp.bfloat16)

    x = hidden_states.reshape(B * T, H).astype(jnp.bfloat16)
    cos, sin = rotary_tables(T, D)            # position_ids = arange(T)

    # Fused qkv projection with RoPE + q-scale in the epilogue -> bf16.
    qkv = qkv_proj_rope(x, w_qkv, cos, sin, num_heads, T)
    qkv = qkv.reshape(B, T, 3 * H)

    attn = attention(qkv, num_heads)                      # [B, T, H] bf16
    out = linear(attn.reshape(B * T, H), w_o, out_dtype=hidden_states.dtype)
    return out.reshape(B, T, H)


# ----------------------------------------------------------------------------
# pure-JAX reference (same bf16-at-MXU semantics) for sanity checking
# ----------------------------------------------------------------------------
def reference(hidden_states, w_qkv, w_o, num_heads):
    B, T, H = hidden_states.shape
    D = H // num_heads
    bf16, f32 = jnp.bfloat16, jnp.float32

    qkv = jnp.dot(hidden_states.astype(bf16), w_qkv.astype(bf16),
                  preferred_element_type=f32)
    q, k, v = jnp.split(qkv, 3, axis=-1)
    sh = lambda x: x.reshape(B, T, num_heads, D).transpose(0, 2, 1, 3)
    q, k, v = sh(q), sh(k), sh(v)

    cos, sin = rotary_tables(T, D)
    rot = lambda x: jnp.concatenate([-x[..., D // 2:], x[..., :D // 2]], axis=-1)
    q = q * cos + rot(q) * sin
    k = k * cos + rot(k) * sin

    s = jnp.einsum("bhqd,bhkd->bhqk", q.astype(bf16), k.astype(bf16),
                   preferred_element_type=f32) / math.sqrt(D)
    causal = jnp.tril(jnp.ones((T, T), dtype=bool))
    s = jnp.where(causal[None, None], s, -1e30)
    p = jax.nn.softmax(s, axis=-1)
    o = jnp.einsum("bhqk,bhkd->bhqd", p.astype(bf16), v.astype(bf16),
                   preferred_element_type=f32)
    o = o.transpose(0, 2, 1, 3).reshape(B * T, H)
    out = jnp.dot(o.astype(bf16), w_o.astype(bf16), preferred_element_type=f32)
    return out.reshape(B, T, H)


if __name__ == "__main__":
    # Llama-like head_dim = 128; 2 heads, seq 512 -> exercises the 2x2 q/kv
    # tiling, the causal-tile DMA/compute skip, and the diagonal-mask split.
    B, T, H, NH = 2, 512, 256, 2

    key = jax.random.PRNGKey(0)
    k1, k2, k3 = jax.random.split(key, 3)
    hidden_states = jax.random.normal(k1, (B, T, H), dtype=jnp.float32)
    # weights stored pre-cast to bf16 (cast hoisted out of the forward path)
    w_qkv = (jax.random.normal(k2, (H, 3 * H), dtype=jnp.float32)
             / math.sqrt(H)).astype(jnp.bfloat16)
    w_o = (jax.random.normal(k3, (H, H), dtype=jnp.float32)
           / math.sqrt(H)).astype(jnp.bfloat16)

    out = quant_llama_attention(hidden_states, w_qkv, w_o, NH)
    out = jax.block_until_ready(out)
    assert out.shape == (B, T, H)

    ref = reference(hidden_states, w_qkv, w_o, NH)
    max_err = float(jnp.max(jnp.abs(out - ref)))
    assert jnp.allclose(out, ref, atol=5e-2, rtol=5e-2), f"max err {max_err}"

    print("KERNEL_OK")
</pallas_src>

<mosaic_0001>
module attributes {stable_mosaic.version = 11 : i64} {
  func.func @_qkv_rope_kernel(%arg0: i32, %arg1: i32, %arg2: i32, %arg3: memref<256x256xbf16, #tpu.memory_space<vmem>>, %arg4: memref<256x128xbf16, #tpu.memory_space<vmem>>, %arg5: memref<256x128xf32, #tpu.memory_space<vmem>>, %arg6: memref<256x128xf32, #tpu.memory_space<vmem>>, %arg7: memref<256x128xbf16, #tpu.memory_space<vmem>>, %arg8: memref<256x128xf32, #tpu.memory_space<vmem>>) attributes {dimension_semantics = [#tpu.dimension_semantics<parallel>, #tpu.dimension_semantics<parallel>, #tpu.dimension_semantics<arbitrary>], iteration_bounds = array<i64: 4, 6, 1>, scalar_prefetch = 0 : i64, scratch_operands = 1 : i64, tpu.core_type = #tpu.core_type<tc>, window_params = [{transform_indices = @transform_0, window_bounds = array<i64: 256, 256>}, {transform_indices = @transform_1, window_bounds = array<i64: 256, 128>}, {transform_indices = @transform_2, window_bounds = array<i64: 256, 128>}, {transform_indices = @transform_3, window_bounds = array<i64: 256, 128>}, {transform_indices = @transform_4, window_bounds = array<i64: 256, 128>}]} {
    %c0_i32 = arith.constant 0 : i32
    %0 = arith.cmpi eq, %arg2, %c0_i32 : i32
    %1 = arith.extui %0 : i1 to i32
    %c0_i32_0 = arith.constant 0 : i32
    %2 = arith.cmpi ne, %1, %c0_i32_0 : i32
    scf.if %2 {
      %cst_10 = arith.constant 0.000000e+00 : f32
      %12 = vector.broadcast %cst_10 : f32 to vector<256x128xf32>
      %c0_11 = arith.constant 0 : index
      %c0_12 = arith.constant 0 : index
      %13 = vector.load %arg8[%c0_11, %c0_12] : memref<256x128xf32, #tpu.memory_space<vmem>>, vector<256x128xf32>
      tpu.vector_store %arg8[%c0_11, %c0_12], %12 {strides = array<i32>} : memref<256x128xf32, #tpu.memory_space<vmem>>, vector<256x128xf32>,
    } else {
    }
    %c0 = arith.constant 0 : index
    %c0_1 = arith.constant 0 : index
    %3 = vector.load %arg8[%c0, %c0_1] : memref<256x128xf32, #tpu.memory_space<vmem>>, vector<256x128xf32>
    %c0_2 = arith.constant 0 : index
    %c0_3 = arith.constant 0 : index
    %4 = vector.load %arg3[%c0_2, %c0_3] : memref<256x256xbf16, #tpu.memory_space<vmem>>, vector<256x256xbf16>
    %c0_4 = arith.constant 0 : index
    %c0_5 = arith.constant 0 : index
    %5 = vector.load %arg4[%c0_4, %c0_5] : memref<256x128xbf16, #tpu.memory_space<vmem>>, vector<256x128xbf16>
    %cst = arith.constant dense<0.000000e+00> : vector<256x128xf32>
    %6 = tpu.matmul %4, %5, %cst {dimension_numbers = #tpu.dot_dimension_numbers<[1], [0], [0], [1], [0, 0, 1, 1], [], []>} : vector<256x256xbf16>, vector<256x128xbf16>, vector<256x128xf32> -> vector<256x128xf32>
    %7 = arith.addf %3, %6 : vector<256x128xf32>
    %c0_6 = arith.constant 0 : index
    %c0_7 = arith.constant 0 : index
    %8 = vector.load %arg8[%c0_6, %c0_7] : memref<256x128xf32, #tpu.memory_space<vmem>>, vector<256x128xf32>
    tpu.vector_store %arg8[%c0_6, %c0_7], %7 {strides = array<i32>} : memref<256x128xf32, #tpu.memory_space<vmem>>, vector<256x128xf32>,
    %c0_i32_8 = arith.constant 0 : i32
    %9 = arith.cmpi eq, %arg2, %c0_i32_8 : i32
    %10 = arith.extui %9 : i1 to i32
    %c0_i32_9 = arith.constant 0 : i32
    %11 = arith.cmpi ne, %10, %c0_i32_9 : i32
    scf.if %11 {
      %c0_10 = arith.constant 0 : index
      %c0_11 = arith.constant 0 : index
      %12 = vector.load %arg8[%c0_10, %c0_11] : memref<256x128xf32, #tpu.memory_space<vmem>>, vector<256x128xf32>
      %13 = vector.extract_strided_slice %12 {offsets = [0, 0], sizes = [256, 64], strides = [1, 1]} : vector<256x128xf32> to vector<256x64xf32>
      %14 = vector.extract_strided_slice %12 {offsets = [0, 64], sizes = [256, 64], strides = [1, 1]} : vector<256x128xf32> to vector<256x64xf32>
      %c0_12 = arith.constant 0 : index
      %c0_13 = arith.constant 0 : index
      %15 = vector.load %arg5[%c0_12, %c0_13] : memref<256x128xf32, #tpu.memory_space<vmem>>, vector<256x64xf32>
      %c0_14 = arith.constant 0 : index
      %c0_15 = arith.constant 0 : index
      %16 = vector.load %arg6[%c0_14, %c0_15] : memref<256x128xf32, #tpu.memory_space<vmem>>, vector<256x64xf32>
      %c2_i32 = arith.constant 2 : i32
      %17 = arith.cmpi slt, %arg1, %c2_i32 : i32
      %18 = arith.extui %17 : i1 to i32
      %c0_i32_16 = arith.constant 0 : i32
      %19 = arith.cmpi ne, %18, %c0_i32_16 : i32
      scf.if %19 {
        %28 = arith.mulf %13, %15 : vector<256x64xf32>
        %29 = arith.mulf %14, %16 : vector<256x64xf32>
        %30 = arith.subf %28, %29 : vector<256x64xf32>
        %cst_21 = arith.constant 0.0883883461 : f32
        %31 = vector.broadcast %cst_21 : f32 to vector<256x64xf32>
        %32 = arith.mulf %30, %31 : vector<256x64xf32>
        %33 = arith.truncf %32 : vector<256x64xf32> to vector<256x64xbf16>
        %c0_22 = arith.constant 0 : index
        %c0_23 = arith.constant 0 : index
        %34 = vector.load %arg7[%c0_22, %c0_23] : memref<256x128xbf16, #tpu.memory_space<vmem>>, vector<256x64xbf16>
        tpu.vector_store %arg7[%c0_22, %c0_23], %33 {strides = array<i32>} : memref<256x128xbf16, #tpu.memory_space<vmem>>, vector<256x64xbf16>,
        %35 = arith.mulf %14, %15 : vector<256x64xf32>
        %36 = arith.mulf %13, %16 : vector<256x64xf32>
        %37 = arith.addf %35, %36 : vector<256x64xf32>
        %cst_24 = arith.constant 0.0883883461 : f32
        %38 = vector.broadcast %cst_24 : f32 to vector<256x64xf32>
        %39 = arith.mulf %37, %38 : vector<256x64xf32>
        %40 = arith.truncf %39 : vector<256x64xf32> to vector<256x64xbf16>
        %c0_25 = arith.constant 0 : index
        %c64 = arith.constant 64 : index
        %41 = vector.load %arg7[%c0_25, %c64] : memref<256x128xbf16, #tpu.memory_space<vmem>>, vector<256x64xbf16>
        tpu.vector_store %arg7[%c0_25, %c64], %40 {strides = array<i32>} : memref<256x128xbf16, #tpu.memory_space<vmem>>, vector<256x64xbf16>,
      } else {
      }
      %c2_i32_17 = arith.constant 2 : i32
      %20 = arith.cmpi sge, %arg1, %c2_i32_17 : i32
      %c4_i32 = arith.constant 4 : i32
      %21 = arith.cmpi slt, %arg1, %c4_i32 : i32
      %22 = arith.andi %20, %21 : i1
      %23 = arith.extui %22 : i1 to i32
      %c0_i32_18 = arith.constant 0 : i32
      %24 = arith.cmpi ne, %23, %c0_i32_18 : i32
      scf.if %24 {
        %28 = arith.mulf %13, %15 : vector<256x64xf32>
        %29 = arith.mulf %14, %16 : vector<256x64xf32>
        %30 = arith.subf %28, %29 : vector<256x64xf32>
        %cst_21 = arith.constant 1.000000e+00 : f32
        %31 = vector.broadcast %cst_21 : f32 to vector<256x64xf32>
        %32 = arith.mulf %30, %31 : vector<256x64xf32>
        %33 = arith.truncf %32 : vector<256x64xf32> to vector<256x64xbf16>
        %c0_22 = arith.constant 0 : index
        %c0_23 = arith.constant 0 : index
        %34 = vector.load %arg7[%c0_22, %c0_23] : memref<256x128xbf16, #tpu.memory_space<vmem>>, vector<256x64xbf16>
        tpu.vector_store %arg7[%c0_22, %c0_23], %33 {strides = array<i32>} : memref<256x128xbf16, #tpu.memory_space<vmem>>, vector<256x64xbf16>,
        %35 = arith.mulf %14, %15 : vector<256x64xf32>
        %36 = arith.mulf %13, %16 : vector<256x64xf32>
        %37 = arith.addf %35, %36 : vector<256x64xf32>
        %cst_24 = arith.constant 1.000000e+00 : f32
        %38 = vector.broadcast %cst_24 : f32 to vector<256x64xf32>
        %39 = arith.mulf %37, %38 : vector<256x64xf32>
        %40 = arith.truncf %39 : vector<256x64xf32> to vector<256x64xbf16>
        %c0_25 = arith.constant 0 : index
        %c64 = arith.constant 64 : index
        %41 = vector.load %arg7[%c0_25, %c64] : memref<256x128xbf16, #tpu.memory_space<vmem>>, vector<256x64xbf16>
        tpu.vector_store %arg7[%c0_25, %c64], %40 {strides = array<i32>} : memref<256x128xbf16, #tpu.memory_space<vmem>>, vector<256x64xbf16>,
      } else {
      }
      %c4_i32_19 = arith.constant 4 : i32
      %25 = arith.cmpi sge, %arg1, %c4_i32_19 : i32
      %26 = arith.extui %25 : i1 to i32
      %c0_i32_20 = arith.constant 0 : i32
      %27 = arith.cmpi ne, %26, %c0_i32_20 : i32
      scf.if %27 {
        %28 = arith.truncf %12 : vector<256x128xf32> to vector<256x128xbf16>
        %c0_21 = arith.constant 0 : index
        %c0_22 = arith.constant 0 : index
        %29 = vector.load %arg7[%c0_21, %c0_22] : memref<256x128xbf16, #tpu.memory_space<vmem>>, vector<256x128xbf16>
        tpu.vector_store %arg7[%c0_21, %c0_22], %28 {strides = array<i32>} : memref<256x128xbf16, #tpu.memory_space<vmem>>, vector<256x128xbf16>,
      } else {
      }
    } else {
    }
    return
  }
  func.func @transform_0(%arg0: i32, %arg1: i32, %arg2: i32) -> (i32, i32) {
    %c0_i32 = arith.constant 0 : i32
    return %arg0, %arg2 : i32, i32
  }
  func.func @transform_1(%arg0: i32, %arg1: i32, %arg2: i32) -> (i32, i32) {
    %c0_i32 = arith.constant 0 : i32
    return %arg2, %arg1 : i32, i32
  }
  func.func @transform_2(%arg0: i32, %arg1: i32, %arg2: i32) -> (i32, i32) {
    %c2_i32 = arith.constant 2 : i32
    %c0_i32 = arith.constant 0 : i32
    %0 = arith.cmpi eq, %c2_i32, %c0_i32 : i32
    %c1_i32 = arith.constant 1 : i32
    %1 = arith.select %0, %c1_i32, %c2_i32 : i32
    %2 = arith.remsi %arg0, %1 : i32
    %c0_i32_0 = arith.constant 0 : i32
    %3 = arith.cmpi ne, %2, %c0_i32_0 : i32
    %c0_i32_1 = arith.constant 0 : i32
    %4 = arith.cmpi slt, %2, %c0_i32_1 : i32
    %c0_i32_2 = arith.constant 0 : i32
    %5 = arith.cmpi slt, %1, %c0_i32_2 : i32
    %6 = arith.xori %4, %5 : i1
    %7 = arith.andi %6, %3 : i1
    %8 = arith.addi %2, %1 : i32
    %9 = arith.select %7, %8, %2 : i32
    %c0_i32_3 = arith.constant 0 : i32
    %c0_i32_4 = arith.constant 0 : i32
    return %9, %c0_i32_3 : i32, i32
  }
  func.func @transform_3(%arg0: i32, %arg1: i32, %arg2: i32) -> (i32, i32) {
    %c2_i32 = arith.constant 2 : i32
    %c0_i32 = arith.constant 0 : i32
    %0 = arith.cmpi eq, %c2_i32, %c0_i32 : i32
    %c1_i32 = arith.constant 1 : i32
    %1 = arith.select %0, %c1_i32, %c2_i32 : i32
    %2 = arith.remsi %arg0, %1 : i32
    %c0_i32_0 = arith.constant 0 : i32
    %3 = arith.cmpi ne, %2, %c0_i32_0 : i32
    %c0_i32_1 = arith.constant 0 : i32
    %4 = arith.cmpi slt, %2, %c0_i32_1 : i32
    %c0_i32_2 = arith.constant 0 : i32
    %5 = arith.cmpi slt, %1, %c0_i32_2 : i32
    %6 = arith.xori %4, %5 : i1
    %7 = arith.andi %6, %3 : i1
    %8 = arith.addi %2, %1 : i32
    %9 = arith.select %7, %8, %2 : i32
    %c0_i32_3 = arith.constant 0 : i32
    %c0_i32_4 = arith.constant 0 : i32
    return %9, %c0_i32_3 : i32, i32
  }
  func.func @transform_4(%arg0: i32, %arg1: i32, %arg2: i32) -> (i32, i32) {
    %c0_i32 = arith.constant 0 : i32
    return %arg0, %arg1 : i32, i32
  }
}

</mosaic_0001>

<llo_original>
// kernel: tpu_custom_call.1
$region0: #{tpu_custom_call.1}
  #allocation0 [shape = 'u32[]', space=smem, size = 0x4, offset = 0x4, fixed_abs, tag = 'smem constant byte address 0x4 - core index']
  #allocation1 [shape = 'u32[72,128]{1,0:T(1,128)}', space=vmem, size = 0x9000, scoped, tag = 'internal scratch']
  #allocation2 [shape = 'f32[256,128]{1,0:T(8,128)}', space=vmem, size = 0x20000, scoped, tag = 'scratch operand']
  %s0 = inlined_call_operand.hbm [shape: bf16[1024,256], index: 0, kind: input, shape index: {}]
  %s1 = inlined_call_operand.hbm [shape: bf16[256,768], index: 1, kind: input, shape index: {}]
  %s2 = inlined_call_operand.hbm [shape: f32[512,128], index: 2, kind: input, shape index: {}]
  %s3 = inlined_call_operand.hbm [shape: f32[512,128], index: 3, kind: input, shape index: {}]
  %s4 = inlined_call_operand.hbm [shape: bf16[1024,768], index: 4, kind: output, shape index: {}]
  %s5 = sld [smem:[#allocation0]]
  $region85: #{tpu_custom_call.1} parent=0
    _
  %s7 = ssub.s32 1, %s5
  %s8 = scalar_select 0, %s7, %s5
  $region1: #{tpu_custom_call.1} parent=0
    #allocation3 [shape = 'u8[262144]{0}', space=vmem, size = 0x40000, scoped, tag = 'input window, operand 0']
    #allocation4 [shape = 's32[2]{0}', space=sflag, size = 0x8, scoped, tag = 'scoped memory for tpu_custom_call.1']
    #allocation5 [shape = 's32[2]{0}', space=sflag, size = 0x8, scoped, tag = 'scoped memory for tpu_custom_call.1']
    #allocation6 [shape = 'u8[131072]{0}', space=vmem, size = 0x20000, scoped, tag = 'input window, operand 1']
    #allocation7 [shape = 's32[2]{0}', space=sflag, size = 0x8, scoped, tag = 'scoped memory for tpu_custom_call.1']
    #allocation8 [shape = 'u8[262144]{0}', space=vmem, size = 0x40000, scoped, tag = 'input window, operand 2']
    #allocation9 [shape = 'u8[262144]{0}', space=vmem, size = 0x40000, scoped, tag = 'input window, operand 3']
    #allocation10 [shape = 's32[2]{0}', space=sflag, size = 0x8, scoped, tag = 'scoped memory for tpu_custom_call.1']
    #allocation11 [shape = 'u8[131072]{0}', space=vmem, size = 0x20000, scoped, tag = 'output window, operand 0']
    %9 = vsyncpa [#allocation4], 0
    %s10 = scalar_lea.sflag [#allocation4], 1
    %11 = vsyncpa %s10, 0
    %12 = vsyncpa [#allocation7], 0
    %s13 = scalar_lea.sflag [#allocation7], 1
    %14 = vsyncpa %s13, 0
    %15 = vsyncpa [#allocation10], 0
    %s16 = scalar_lea.sflag [#allocation10], 1
    %17 = vsyncpa %s16, 0
    %18 = vsyncpa [#allocation5], 0
    %s19 = scalar_lea.sflag [#allocation5], 1
    %20 = vsyncpa %s19, 0
    loop: start=0, step=1, limit=26
    $region2: #{tpu_custom_call.1} parent=1 // loop_pre_header
      _
    $region3: #{tpu_custom_call.1} parent=1 // loop_header
      %s22 = sphi 0, %s26
      %p23 = scmp.ge.s32.totalorder %s22, 26
      %s29 = sphi 0, %s48
      %s30 = sphi 0, %s44
      %s31 = sphi 0, %s40
      %s32 = sphi 0, %s29
      %s33 = sphi 0, %s30
      %s34 = sphi 0, %s31
      %s35 = sphi 0, %s32
      %s36 = sphi 0, %s33
      %s37 = sphi 0, %s34
      %s53 = sphi 0, %s55
      %s56 = sphi 0, %s53
      %s57 = sphi 0, %s56
      %s73 = sphi 0, %s57
      %s81 = sphi 0, %s83
      %s84 = sphi 0, %s81
      %s85 = sphi 0, %s84
      %s101 = sphi 0, %s85
      %s131 = sphi 0, %s133
      %s134 = sphi 0, %s131
      %s135 = sphi 0, %s134
      %s151 = sphi 0, %s135
      %s181 = sphi 0, %s183
      %s184 = sphi 0, %s181
      %s185 = sphi 0, %s184
      %s201 = sphi 0, %s185
      %s209 = sphi 0, %s211
      %s212 = sphi 0, %s209
      %s213 = sphi 0, %s212
      %s229 = sphi 0, %s213
    $region4: #{tpu_custom_call.1} parent=1 // loop_header_branch
      %25 = sbr.rel (%p23) target = $region8
    $region5: #{tpu_custom_call.1} parent=1 // loop_body
      %s27 = ssub.s32 %s22, 1
      %s28 = ssub.s32 %s22, 2
      %s38 = sadd.s32 1, %s31
      %p39 = scmp.ge.s32.totalorder %s38, 1
      %s40 = scalar_select %p39, 0, %s38
      %s41 = sadd.s32 1, %s30
      %s42 = scalar_select %p39, %s41, %s30
      %p43 = scmp.ge.s32.totalorder %s42, 6
      %s44 = scalar_select %p43, 0, %s42
      %s45 = sadd.s32 1, %s29
      %s46 = scalar_select %p43, %s45, %s29
      %p47 = scmp.ge.s32.totalorder %s46, 4
      %s48 = scalar_select %p47, 0, %s46
      %s49 = ssub.s32 %s29, %s48
      %s50 = ssub.s32 %s31, %s40
      %s51 = sor.u32 %s49, %s50
      %p52 = scmp.eq.s32.totalorder %s51, 0
      %s54 = sadd.s32 %s53, 1
      %s55 = scalar_select %p52, %s53, %s54
      %p58 = pneg %p52
      %p59 = scmp.eq.s32.totalorder %s22, 23
      %p60 = por %p58, %p59
      %p61 = scmp.ne.s32.totalorder %s53, %s56
      %p62 = scmp.eq.s32.totalorder %s22, 0
      %p63 = por %p61, %p62
      %p64 = scmp.ne.s32.totalorder %s53, %s56
      %p65 = scmp.eq.s32.totalorder %s27, 23
      %p66 = por %p64, %p65
      %p67 = scmp.ne.s32.totalorder %s56, %s57
      %p68 = scmp.eq.s32.totalorder %s27, 0
      %p69 = por %p67, %p68
      %p70 = scmp.ne.s32.totalorder %s56, %s57
      %p71 = scmp.eq.s32.totalorder %s28, 23
      %p72 = por %p70, %p71
      %p74 = scmp.ne.s32.totalorder %s57, %s73
      %p75 = scmp.eq.s32.totalorder %s28, 0
      %p76 = por %p74, %p75
      %s77 = ssub.s32 %s31, %s40
      %s78 = ssub.s32 %s30, %s44
      %s79 = sor.u32 %s77, %s78
      %p80 = scmp.eq.s32.totalorder %s79, 0
      %s82 = sadd.s32 %s81, 1
      %s83 = scalar_select %p80, %s81, %s82
      %p86 = pneg %p80
      %p87 = scmp.eq.s32.totalorder %s22, 23
      %p88 = por %p86, %p87
      %p89 = scmp.ne.s32.totalorder %s81, %s84
      %p90 = scmp.eq.s32.totalorder %s22, 0
      %p91 = por %p89, %p90
      %p92 = scmp.ne.s32.totalorder %s81, %s84
      %p93 = scmp.eq.s32.totalorder %s27, 23
      %p94 = por %p92, %p93
      %p95 = scmp.ne.s32.totalorder %s84, %s85
      %p96 = scmp.eq.s32.totalorder %s27, 0
      %p97 = por %p95, %p96
      %p98 = scmp.ne.s32.totalorder %s84, %s85
      %p99 = scmp.eq.s32.totalorder %s28, 23
      %p100 = por %p98, %p99
      %p102 = scmp.ne.s32.totalorder %s85, %s101
      %p103 = scmp.eq.s32.totalorder %s28, 0
      %p104 = por %p102, %p103
      %p105 = scmp.lt.s32.totalorder %s29, 0
      %s106 = ssub.s32 0, %s29
      %s107 = scalar_select %p105, %s106, %s29
      %s108 = sand.u32 %s107, 1
      %s109 = ssub.s32 0, %s108
      %s110 = scalar_select %p105, %s109, %s108
      %p111 = scmp.ne.s32.totalorder %s110, 0
      %p112 = scmp.lt.s32.totalorder %s110, 0
      %p113 = pnand %p112, %p111
      %p114 = pneg %p113
      %s115 = sadd.s32 %s110, 2
      %s116 = scalar_select %p114, %s115, %s110
      %p117 = scmp.lt.s32.totalorder %s48, 0
      %s118 = ssub.s32 0, %s48
      %s119 = scalar_select %p117, %s118, %s48
      %s120 = sand.u32 %s119, 1
      %s121 = ssub.s32 0, %s120
      %s122 = scalar_select %p117, %s121, %s120
      %p123 = scmp.ne.s32.totalorder %s122, 0
      %p124 = scmp.lt.s32.totalorder %s122, 0
      %p125 = pnand %p124, %p123
      %p126 = pneg %p125
      %s127 = sadd.s32 %s122, 2
      %s128 = scalar_select %p126, %s127, %s122
      %s129 = ssub.s32 %s116, %s128
      %p130 = scmp.eq.s32.totalorder %s129, 0
      %s132 = sadd.s32 %s131, 1
      %s133 = scalar_select %p130, %s131, %s132
      %p136 = pneg %p130
      %p137 = scmp.eq.s32.totalorder %s22, 23
      %p138 = por %p136, %p137
      %p139 = scmp.ne.s32.totalorder %s131, %s134
      %p140 = scmp.eq.s32.totalorder %s22, 0
      %p141 = por %p139, %p140
      %p142 = scmp.ne.s32.totalorder %s131, %s134
      %p143 = scmp.eq.s32.totalorder %s27, 23
      %p144 = por %p142, %p143
      %p145 = scmp.ne.s32.totalorder %s134, %s135
      %p146 = scmp.eq.s32.totalorder %s27, 0
      %p147 = por %p145, %p146
      %p148 = scmp.ne.s32.totalorder %s134, %s135
      %p149 = scmp.eq.s32.totalorder %s28, 23
      %p150 = por %p148, %p149
      %p152 = scmp.ne.s32.totalorder %s135, %s151
      %p153 = scmp.eq.s32.totalorder %s28, 0
      %p154 = por %p152, %p153
      %p155 = scmp.lt.s32.totalorder %s29, 0
      %s156 = ssub.s32 0, %s29
      %s157 = scalar_select %p155, %s156, %s29
      %s158 = sand.u32 %s157, 1
      %s159 = ssub.s32 0, %s158
      %s160 = scalar_select %p155, %s159, %s158
      %p161 = scmp.ne.s32.totalorder %s160, 0
      %p162 = scmp.lt.s32.totalorder %s160, 0
      %p163 = pnand %p162, %p161
      %p164 = pneg %p163
      %s165 = sadd.s32 %s160, 2
      %s166 = scalar_select %p164, %s165, %s160
      %p167 = scmp.lt.s32.totalorder %s48, 0
      %s168 = ssub.s32 0, %s48
      %s169 = scalar_select %p167, %s168, %s48
      %s170 = sand.u32 %s169, 1
      %s171 = ssub.s32 0, %s170
      %s172 = scalar_select %p167, %s171, %s170
      %p173 = scmp.ne.s32.totalorder %s172, 0
      %p174 = scmp.lt.s32.totalorder %s172, 0
      %p175 = pnand %p174, %p173
      %p176 = pneg %p175
      %s177 = sadd.s32 %s172, 2
      %s178 = scalar_select %p176, %s177, %s172
      %s179 = ssub.s32 %s166, %s178
      %p180 = scmp.eq.s32.totalorder %s179, 0
      %s182 = sadd.s32 %s181, 1
      %s183 = scalar_select %p180, %s181, %s182
      %p186 = pneg %p180
      %p187 = scmp.eq.s32.totalorder %s22, 23
      %p188 = por %p186, %p187
      %p189 = scmp.ne.s32.totalorder %s181, %s184
      %p190 = scmp.eq.s32.totalorder %s22, 0
      %p191 = por %p189, %p190
      %p192 = scmp.ne.s32.totalorder %s181, %s184
      %p193 = scmp.eq.s32.totalorder %s27, 23
      %p194 = por %p192, %p193
      %p195 = scmp.ne.s32.totalorder %s184, %s185
      %p196 = scmp.eq.s32.totalorder %s27, 0
      %p197 = por %p195, %p196
      %p198 = scmp.ne.s32.totalorder %s184, %s185
      %p199 = scmp.eq.s32.totalorder %s28, 23
      %p200 = por %p198, %p199
      %p202 = scmp.ne.s32.totalorder %s185, %s201
      %p203 = scmp.eq.s32.totalorder %s28, 0
      %p204 = por %p202, %p203
      %s205 = ssub.s32 %s29, %s48
      %s206 = ssub.s32 %s30, %s44
      %s207 = sor.u32 %s205, %s206
      %p208 = scmp.eq.s32.totalorder %s207, 0
      %s210 = sadd.s32 %s209, 1
      %s211 = scalar_select %p208, %s209, %s210
      %p214 = pneg %p208
      %p215 = scmp.eq.s32.totalorder %s22, 23
      %p216 = por %p214, %p215
      %p217 = scmp.ne.s32.totalorder %s209, %s212
      %p218 = scmp.eq.s32.totalorder %s22, 0
      %p219 = por %p217, %p218
      %p220 = scmp.ne.s32.totalorder %s209, %s212
      %p221 = scmp.eq.s32.totalorder %s27, 23
      %p222 = por %p220, %p221
      %p223 = scmp.ne.s32.totalorder %s212, %s213
      %p224 = scmp.eq.s32.totalorder %s27, 0
      %p225 = por %p223, %p224
      %p226 = scmp.ne.s32.totalorder %s212, %s213
      %p227 = scmp.eq.s32.totalorder %s28, 23
      %p228 = por %p226, %p227
      %p230 = scmp.ne.s32.totalorder %s213, %s229
      %p231 = scmp.eq.s32.totalorder %s28, 0
      %p232 = por %p230, %p231
      %p233 = scmp.le.s32.totalorder 1, %s22
      %p234 = scmp.lt.s32.totalorder %s22, 25
      %p235 = pnand %p233, %p234
      %p236 = pneg %p235
      // Predicated region
      $region9: #{tpu_custom_call.1} parent=5 // pred_check
        _
      $region10: #{tpu_custom_call.1} parent=5 // pred_check_branch
        %238 = sbr.rel (%p235) target = $region12
      $region11: #{tpu_custom_call.1} parent=5 // pred_region
        %s239 = ssub.s32 %s22, 1
      $region12: #{tpu_custom_call.1} parent=5 // pred_fallthru
        _
      %p240 = scmp.lt.s32.totalorder %s22, 24
      // Predicated region
      $region13: #{tpu_custom_call.1} parent=5 // pred_check
        %p241 = pneg %p240
      $region14: #{tpu_custom_call.1} parent=5 // pred_check_branch
        %243 = sbr.rel (%p241) target = $region16
      $region15: #{tpu_custom_call.1} parent=5 // pred_region
        // Predicated region
        $region17: #{tpu_custom_call.1} parent=15 // pred_check
          %p244 = pneg %p63
        $region18: #{tpu_custom_call.1} parent=15 // pred_check_branch
          %246 = sbr.rel (%p244) target = $region20
        $region19: #{tpu_custom_call.1} parent=15 // pred_region
          %s247 = sand.u32 %s53, 1
          %s248 = scalar_lea.sflag [#allocation4], %s247
          %s249 = sand.u32 %s53, 1
          %s250 = smul.addr %s249, 256
          %s251 = scalar_lea.vmem [#allocation3], %s250
          %s252 = smul.u32 32, %s29
          %s253 = smul.u32 2, %s31
          %255 = vsyncadd %s248, 0
          %s256 = smul.addr %s252, 2
          %s257 = sadd.s32 %s253, %s256
          %s258 = smul.addr %s257, 4
          %s259 = scalar_lea.hbm %s0, %s258
          %s260 = sshll.u32 %s259, 4
          %s261 = int_to_ptr.hbm [resolvable:$true] %s260
          %s262 = sshll.u32 %s251, 4
          %s263 = int_to_ptr.vmem [resolvable:$true] %s262
          %268 = dma.hbm_to_vmem [thread:$0]  %s261, 4096, %s263, %s248, 128, 128, 8
        $region20: #{tpu_custom_call.1} parent=15 // pred_fallthru
          _
        // Predicated region
        $region21: #{tpu_custom_call.1} parent=15 // pred_check
          %p269 = pneg %p91
        $region22: #{tpu_custom_call.1} parent=15 // pred_check_branch
          %271 = sbr.rel (%p269) target = $region24
        $region23: #{tpu_custom_call.1} parent=15 // pred_region
          %s272 = sand.u32 %s22, 1
          %s273 = scalar_lea.sflag [#allocation7], %s272
          %s274 = sand.u32 %s81, 1
          %s275 = smul.addr %s274, 128
          %s276 = scalar_lea.vmem [#allocation6], %s275
          %s277 = smul.u32 32, %s31
          %279 = vsyncadd %s273, 0
          %s280 = smul.addr %s277, 6
          %s281 = sadd.s32 %s30, %s280
          %s282 = smul.addr %s281, 4
          %s283 = scalar_lea.hbm %s1, %s282
          %s284 = sshll.u32 %s283, 4
          %s285 = int_to_ptr.hbm [resolvable:$true] %s284
          %s286 = sshll.u32 %s276, 4
          %s287 = int_to_ptr.vmem [resolvable:$true] %s286
          %292 = dma.hbm_to_vmem [thread:$0]  %s285, 2048, %s287, %s273, 384, 64, 4
        $region24: #{tpu_custom_call.1} parent=15 // pred_fallthru
          _
        // Predicated region
        $region25: #{tpu_custom_call.1} parent=15 // pred_check
          %p293 = pneg %p141
        $region26: #{tpu_custom_call.1} parent=15 // pred_check_branch
          %295 = sbr.rel (%p293) target = $region28
        $region27: #{tpu_custom_call.1} parent=15 // pred_region
          %s296 = sand.u32 %s22, 1
          %s297 = scalar_lea.sflag [#allocation7], %s296
          %s298 = sand.u32 %s131, 1
          %s299 = smul.addr %s298, 256
          %s300 = scalar_lea.vmem [#allocation8], %s299
          %p301 = scmp.lt.s32.totalorder %s29, 0
          %s302 = ssub.s32 0, %s29
          %s303 = scalar_select %p301, %s302, %s29
          %s304 = sand.u32 %s303, 1
          %s305 = ssub.s32 0, %s304
          %s306 = scalar_select %p301, %s305, %s304
          %p307 = scmp.ne.s32.totalorder %s306, 0
          %p308 = scmp.lt.s32.totalorder %s306, 0
          %p309 = pnand %p308, %p307
          %p310 = pneg %p309
          %s311 = sadd.s32 %s306, 2
          %s312 = scalar_select %p310, %s311, %s306
          %s313 = smul.u32 32, %s312
          %315 = vsyncadd %s297, 0
          %s316 = smul.addr %s313, 8
          %s317 = scalar_lea.hbm %s2, %s316
          %s318 = sshll.u32 %s317, 4
          %s319 = int_to_ptr.hbm [resolvable:$true] %s318
          %s320 = sshll.u32 %s300, 4
          %s321 = int_to_ptr.vmem [resolvable:$true] %s320
          %326 = dma.hbm_to_vmem [thread:$0]  %s319, 4096, %s321, %s297, 128, 128, 8
        $region28: #{tpu_custom_call.1} parent=15 // pred_fallthru
          _
        // Predicated region
        $region29: #{tpu_custom_call.1} parent=15 // pred_check
          %p327 = pneg %p191
        $region30: #{tpu_custom_call.1} parent=15 // pred_check_branch
          %329 = sbr.rel (%p327) target = $region32
        $region31: #{tpu_custom_call.1} parent=15 // pred_region
          %s330 = sand.u32 %s181, 1
          %s331 = scalar_lea.sflag [#allocation10], %s330
          %s332 = sand.u32 %s181, 1
          %s333 = smul.addr %s332, 256
          %s334 = scalar_lea.vmem [#allocation9], %s333
          %p335 = scmp.lt.s32.totalorder %s29, 0
          %s336 = ssub.s32 0, %s29
          %s337 = scalar_select %p335, %s336, %s29
          %s338 = sand.u32 %s337, 1
          %s339 = ssub.s32 0, %s338
          %s340 = scalar_select %p335, %s339, %s338
          %p341 = scmp.ne.s32.totalorder %s340, 0
          %p342 = scmp.lt.s32.totalorder %s340, 0
          %p343 = pnand %p342, %p341
          %p344 = pneg %p343
          %s345 = sadd.s32 %s340, 2
          %s346 = scalar_select %p344, %s345, %s340
          %s347 = smul.u32 32, %s346
          %349 = vsyncadd %s331, 0
          %s350 = smul.addr %s347, 8
          %s351 = scalar_lea.hbm %s3, %s350
          %s352 = sshll.u32 %s351, 4
          %s353 = int_to_ptr.hbm [resolvable:$true] %s352
          %s354 = sshll.u32 %s334, 4
          %s355 = int_to_ptr.vmem [resolvable:$true] %s354
          %360 = dma.hbm_to_vmem [thread:$0]  %s353, 4096, %s355, %s331, 128, 128, 8
        $region32: #{tpu_custom_call.1} parent=15 // pred_fallthru
          _
      $region16: #{tpu_custom_call.1} parent=5 // pred_fallthru
        _
      %p361 = scmp.le.s32.totalorder 1, %s22
      %p362 = scmp.lt.s32.totalorder %s22, 25
      %p363 = pnand %p361, %p362
      %p364 = pneg %p363
      // Predicated region
      $region33: #{tpu_custom_call.1} parent=5 // pred_check
        _
      $region34: #{tpu_custom_call.1} parent=5 // pred_check_branch
        %366 = sbr.rel (%p363) target = $region36
      $region35: #{tpu_custom_call.1} parent=5 // pred_region
        %s367 = ssub.s32 %s22, 1
        %s368 = sand.u32 %s56, 1
        %s369 = scalar_lea.sflag [#allocation4], %s368
        %s370 = sand.u32 %s56, 1
        %s371 = smul.addr %s370, 256
        %s372 = scalar_lea.vmem [#allocation3], %s371
        // Predicated region
        $region37: #{tpu_custom_call.1} parent=35 // pred_check
          %p373 = pneg %p69
        $region38: #{tpu_custom_call.1} parent=35 // pred_check_branch
          %375 = sbr.rel (%p373) target = $region40
        $region39: #{tpu_custom_call.1} parent=35 // pred_region
          %377 = dma.done %s369, 4096
        $region40: #{tpu_custom_call.1} parent=35 // pred_fallthru
          _
        %s378 = sand.u32 %s27, 1
        %s379 = scalar_lea.sflag [#allocation7], %s378
        %s380 = sand.u32 %s84, 1
        %s381 = smul.addr %s380, 128
        %s382 = scalar_lea.vmem [#allocation6], %s381
        // Predicated region
        $region41: #{tpu_custom_call.1} parent=35 // pred_check
          %p383 = pneg %p97
        $region42: #{tpu_custom_call.1} parent=35 // pred_check_branch
          %385 = sbr.rel (%p383) target = $region44
        $region43: #{tpu_custom_call.1} parent=35 // pred_region
          %387 = dma.done %s379, 2048
        $region44: #{tpu_custom_call.1} parent=35 // pred_fallthru
          _
        %s388 = sand.u32 %s27, 1
        %s389 = scalar_lea.sflag [#allocation7], %s388
        %s390 = sand.u32 %s134, 1
        %s391 = smul.addr %s390, 256
        %s392 = scalar_lea.vmem [#allocation8], %s391
        // Predicated region
        $region45: #{tpu_custom_call.1} parent=35 // pred_check
          %p393 = pneg %p147
        $region46: #{tpu_custom_call.1} parent=35 // pred_check_branch
          %395 = sbr.rel (%p393) target = $region48
        $region47: #{tpu_custom_call.1} parent=35 // pred_region
          %397 = dma.done %s389, 4096
        $region48: #{tpu_custom_call.1} parent=35 // pred_fallthru
          _
        %s398 = sand.u32 %s184, 1
        %s399 = scalar_lea.sflag [#allocation10], %s398
        %s400 = sand.u32 %s184, 1
        %s401 = smul.addr %s400, 256
        %s402 = scalar_lea.vmem [#allocation9], %s401
        // Predicated region
        $region49: #{tpu_custom_call.1} parent=35 // pred_check
          %p403 = pneg %p197
        $region50: #{tpu_custom_call.1} parent=35 // pred_check_branch
          %405 = sbr.rel (%p403) target = $region52
        $region51: #{tpu_custom_call.1} parent=35 // pred_region
          %407 = dma.done %s399, 4096
        $region52: #{tpu_custom_call.1} parent=35 // pred_fallthru
          _
        %s408 = sand.u32 %s56, 1
        %s409 = scalar_lea.sflag [#allocation4], %s408
        %s410 = sand.u32 %s56, 1
        %s411 = smul.addr %s410, 256
        %s412 = scalar_lea.vmem [#allocation3], %s411
        %p413 = pneg %p69
        %p414 = pneg %p66
        %s415 = sand.u32 %s27, 1
        %s416 = scalar_lea.sflag [#allocation7], %s415
        %s417 = sand.u32 %s84, 1
        %s418 = smul.addr %s417, 128
        %s419 = scalar_lea.vmem [#allocation6], %s418
        %p420 = pneg %p97
        %p421 = pneg %p94
        %s422 = sand.u32 %s27, 1
        %s423 = scalar_lea.sflag [#allocation7], %s422
        %s424 = sand.u32 %s134, 1
        %s425 = smul.addr %s424, 256
        %s426 = scalar_lea.vmem [#allocation8], %s425
        %p427 = pneg %p147
        %p428 = pneg %p144
        %s429 = sand.u32 %s184, 1
        %s430 = scalar_lea.sflag [#allocation10], %s429
        %s431 = sand.u32 %s184, 1
        %s432 = smul.addr %s431, 256
        %s433 = scalar_lea.vmem [#allocation9], %s432
        %p434 = pneg %p197
        %p435 = pneg %p194
        %p436 = pneg %p225
        %p437 = pneg %p222
        %s438 = sand.u32 %s212, 1
        %s439 = scalar_lea.sflag [#allocation5], %s438
        %s440 = sand.u32 %s212, 1
        %s441 = smul.addr %s440, 128
        %s442 = scalar_lea.vmem [#allocation11], %s441
        %s443 = smul.u32 32, %s32
        %s444 = smul.u32 2, %s34
        %s445 = smul.u32 32, %s34
        %p446 = scmp.lt.s32.totalorder %s32, 0
        %s447 = ssub.s32 0, %s32
        %s448 = scalar_select %p446, %s447, %s32
        %s449 = sand.u32 %s448, 1
        %s450 = ssub.s32 0, %s449
        %s451 = scalar_select %p446, %s450, %s449
        %p452 = scmp.ne.s32.totalorder %s451, 0
        %p453 = scmp.lt.s32.totalorder %s451, 0
        %p454 = pnand %p453, %p452
        %p455 = pneg %p454
        %s456 = sadd.s32 %s451, 2
        %s457 = scalar_select %p455, %s456, %s451
        %s458 = smul.u32 32, %s457
        %p459 = scmp.lt.s32.totalorder %s32, 0
        %s460 = ssub.s32 0, %s32
        %s461 = scalar_select %p459, %s460, %s32
        %s462 = sand.u32 %s461, 1
        %s463 = ssub.s32 0, %s462
        %s464 = scalar_select %p459, %s463, %s462
        %p465 = scmp.ne.s32.totalorder %s464, 0
        %p466 = scmp.lt.s32.totalorder %s464, 0
        %p467 = pnand %p466, %p465
        %p468 = pneg %p467
        %s469 = sadd.s32 %s464, 2
        %s470 = scalar_select %p468, %s469, %s464
        %s471 = smul.u32 32, %s470
        %s472 = smul.u32 32, %s32
        %p473 = scmp.eq.s32.totalorder %s34, 0
        // Predicated region
        $region53: #{tpu_custom_call.1} parent=35 // pred_check
          %p474 = pneg %p473
        $region54: #{tpu_custom_call.1} parent=35 // pred_check_branch
          %476 = sbr.rel (%p474) target = $region56
        $region55: #{tpu_custom_call.1} parent=35 // pred_region
          %477 = vst [vmem:[#allocation2] sm:$0xff] 0.0
          %478 = vst [vmem:[#allocation2 + $0x8] sm:$0xff] 0.0
          %479 = vst [vmem:[#allocation2 + $0x10] sm:$0xff] 0.0
          %480 = vst [vmem:[#allocation2 + $0x18] sm:$0xff] 0.0
          %481 = vst [vmem:[#allocation2 + $0x20] sm:$0xff] 0.0
          %482 = vst [vmem:[#allocation2 + $0x28] sm:$0xff] 0.0
          %483 = vst [vmem:[#allocation2 + $0x30] sm:$0xff] 0.0
          %484 = vst [vmem:[#allocation2 + $0x38] sm:$0xff] 0.0
          %485 = vst [vmem:[#allocation2 + $0x40] sm:$0xff] 0.0
          %486 = vst [vmem:[#allocation2 + $0x48] sm:$0xff] 0.0
          %487 = vst [vmem:[#allocation2 + $0x50] sm:$0xff] 0.0
          %488 = vst [vmem:[#allocation2 + $0x58] sm:$0xff] 0.0
          %489 = vst [vmem:[#allocation2 + $0x60] sm:$0xff] 0.0
          %490 = vst [vmem:[#allocation2 + $0x68] sm:$0xff] 0.0
          %491 = vst [vmem:[#allocation2 + $0x70] sm:$0xff] 0.0
          %492 = vst [vmem:[#allocation2 + $0x78] sm:$0xff] 0.0
          %493 = vst [vmem:[#allocation2 + $0x80] sm:$0xff] 0.0
          %494 = vst [vmem:[#allocation2 + $0x88] sm:$0xff] 0.0
          %495 = vst [vmem:[#allocation2 + $0x90] sm:$0xff] 0.0
          %496 = vst [vmem:[#allocation2 + $0x98] sm:$0xff] 0.0
          %497 = vst [vmem:[#allocation2 + $0xa0] sm:$0xff] 0.0
          %498 = vst [vmem:[#allocation2 + $0xa8] sm:$0xff] 0.0
          %499 = vst [vmem:[#allocation2 + $0xb0] sm:$0xff] 0.0
          %500 = vst [vmem:[#allocation2 + $0xb8] sm:$0xff] 0.0
          %501 = vst [vmem:[#allocation2 + $0xc0] sm:$0xff] 0.0
          %502 = vst [vmem:[#allocation2 + $0xc8] sm:$0xff] 0.0
          %503 = vst [vmem:[#allocation2 + $0xd0] sm:$0xff] 0.0
          %504 = vst [vmem:[#allocation2 + $0xd8] sm:$0xff] 0.0
          %505 = vst [vmem:[#allocation2 + $0xe0] sm:$0xff] 0.0
          %506 = vst [vmem:[#allocation2 + $0xe8] sm:$0xff] 0.0
          %507 = vst [vmem:[#allocation2 + $0xf0] sm:$0xff] 0.0
          %508 = vst [vmem:[#allocation2 + $0xf8] sm:$0xff] 0.0
        $region56: #{tpu_custom_call.1} parent=35 // pred_fallthru
          _
        %v509 = vld [vmem:[#allocation2] sm:$0xff]
        %v510 = vld [vmem:[#allocation2 + $0x8] sm:$0xff]
        %v511 = vld [vmem:[#allocation2 + $0x10] sm:$0xff]
        %v512 = vld [vmem:[#allocation2 + $0x18] sm:$0xff]
        %v513 = vld [vmem:[#allocation2 + $0x20] sm:$0xff]
        %v514 = vld [vmem:[#allocation2 + $0x28] sm:$0xff]
        %v515 = vld [vmem:[#allocation2 + $0x30] sm:$0xff]
        %v516 = vld [vmem:[#allocation2 + $0x38] sm:$0xff]
        %v517 = vld [vmem:[#allocation2 + $0x40] sm:$0xff]
        %v518 = vld [vmem:[#allocation2 + $0x48] sm:$0xff]
        %v519 = vld [vmem:[#allocation2 + $0x50] sm:$0xff]
        %v520 = vld [vmem:[#allocation2 + $0x58] sm:$0xff]
        %v521 = vld [vmem:[#allocation2 + $0x60] sm:$0xff]
        %v522 = vld [vmem:[#allocation2 + $0x68] sm:$0xff]
        %v523 = vld [vmem:[#allocation2 + $0x70] sm:$0xff]
        %v524 = vld [vmem:[#allocation2 + $0x78] sm:$0xff]
        %v525 = vld [vmem:[#allocation2 + $0x80] sm:$0xff]
        %v526 = vld [vmem:[#allocation2 + $0x88] sm:$0xff]
        %v527 = vld [vmem:[#allocation2 + $0x90] sm:$0xff]
        %v528 = vld [vmem:[#allocation2 + $0x98] sm:$0xff]
        %v529 = vld [vmem:[#allocation2 + $0xa0] sm:$0xff]
        %v530 = vld [vmem:[#allocation2 + $0xa8] sm:$0xff]
        %v531 = vld [vmem:[#allocation2 + $0xb0] sm:$0xff]
        %v532 = vld [vmem:[#allocation2 + $0xb8] sm:$0xff]
        %v533 = vld [vmem:[#allocation2 + $0xc0] sm:$0xff]
        %v534 = vld [vmem:[#allocation2 + $0xc8] sm:$0xff]
        %v535 = vld [vmem:[#allocation2 + $0xd0] sm:$0xff]
        %v536 = vld [vmem:[#allocation2 + $0xd8] sm:$0xff]
        %v537 = vld [vmem:[#allocation2 + $0xe0] sm:$0xff]
        %v538 = vld [vmem:[#allocation2 + $0xe8] sm:$0xff]
        %v539 = vld [vmem:[#allocation2 + $0xf0] sm:$0xff]
        %v540 = vld [vmem:[#allocation2 + $0xf8] sm:$0xff]
        %v541 = vld [vmem:[%s372] sm:$0xff]
        %v542 = vld [vmem:[%s372 + $0x8] sm:$0xff]
        %v543 = vld [vmem:[%s372 + $0x10] sm:$0xff]
        %v544 = vld [vmem:[%s372 + $0x18] sm:$0xff]
        %v545 = vld [vmem:[%s372 + $0x20] sm:$0xff]
        %v546 = vld [vmem:[%s372 + $0x28] sm:$0xff]
        %v547 = vld [vmem:[%s372 + $0x30] sm:$0xff]
        %v548 = vld [vmem:[%s372 + $0x38] sm:$0xff]
        %v549 = vld [vmem:[%s372 + $0x40] sm:$0xff]
        %v550 = vld [vmem:[%s372 + $0x48] sm:$0xff]
        %v551 = vld [vmem:[%s372 + $0x50] sm:$0xff]
        %v552 = vld [vmem:[%s372 + $0x58] sm:$0xff]
        %v553 = vld [vmem:[%s372 + $0x60] sm:$0xff]
        %v554 = vld [vmem:[%s372 + $0x68] sm:$0xff]
        %v555 = vld [vmem:[%s372 + $0x70] sm:$0xff]
        %v556 = vld [vmem:[%s372 + $0x78] sm:$0xff]
        %v557 = vld [vmem:[%s372 + $0x80] sm:$0xff]
        %v558 = vld [vmem:[%s372 + $0x88] sm:$0xff]
        %v559 = vld [vmem:[%s372 + $0x90] sm:$0xff]
        %v560 = vld [vmem:[%s372 + $0x98] sm:$0xff]
        %v561 = vld [vmem:[%s372 + $0xa0] sm:$0xff]
        %v562 = vld [vmem:[%s372 + $0xa8] sm:$0xff]
        %v563 = vld [vmem:[%s372 + $0xb0] sm:$0xff]
        %v564 = vld [vmem:[%s372 + $0xb8] sm:$0xff]
        %v565 = vld [vmem:[%s372 + $0xc0] sm:$0xff]
        %v566 = vld [vmem:[%s372 + $0xc8] sm:$0xff]
        %v567 = vld [vmem:[%s372 + $0xd0] sm:$0xff]
        %v568 = vld [vmem:[%s372 + $0xd8] sm:$0xff]
        %v569 = vld [vmem:[%s372 + $0xe0] sm:$0xff]
        %v570 = vld [vmem:[%s372 + $0xe8] sm:$0xff]
        %v571 = vld [vmem:[%s372 + $0xf0] sm:$0xff]
        %v572 = vld [vmem:[%s372 + $0xf8] sm:$0xff]
        %v573 = vld [vmem:[%s382] sm:$0xf]
        %v574 = vld [vmem:[%s382 + $0x4] sm:$0xf]
        %v575 = vld [vmem:[%s382 + $0x8] sm:$0xf]
        %v576 = vld [vmem:[%s382 + $0xc] sm:$0xf]
        %v577 = vld [vmem:[%s382 + $0x10] sm:$0xf]
        %v578 = vld [vmem:[%s382 + $0x14] sm:$0xf]
        %v579 = vld [vmem:[%s382 + $0x18] sm:$0xf]
        %v580 = vld [vmem:[%s382 + $0x1c] sm:$0xf]
        %v581 = vld [vmem:[%s382 + $0x20] sm:$0xf]
        %v582 = vld [vmem:[%s382 + $0x24] sm:$0xf]
        %v583 = vld [vmem:[%s382 + $0x28] sm:$0xf]
        %v584 = vld [vmem:[%s382 + $0x2c] sm:$0xf]
        %v585 = vld [vmem:[%s382 + $0x30] sm:$0xf]
        %v586 = vld [vmem:[%s382 + $0x34] sm:$0xf]
        %v587 = vld [vmem:[%s382 + $0x38] sm:$0xf]
        %v588 = vld [vmem:[%s382 + $0x3c] sm:$0xf]
        %v589 = vld [vmem:[%s382 + $0x40] sm:$0xf]
        %v590 = vld [vmem:[%s382 + $0x44] sm:$0xf]
        %v591 = vld [vmem:[%s382 + $0x48] sm:$0xf]
        %v592 = vld [vmem:[%s382 + $0x4c] sm:$0xf]
        %v593 = vld [vmem:[%s382 + $0x50] sm:$0xf]
        %v594 = vld [vmem:[%s382 + $0x54] sm:$0xf]
        %v595 = vld [vmem:[%s382 + $0x58] sm:$0xf]
        %v596 = vld [vmem:[%s382 + $0x5c] sm:$0xf]
        %v597 = vld [vmem:[%s382 + $0x60] sm:$0xf]
        %v598 = vld [vmem:[%s382 + $0x64] sm:$0xf]
        %v599 = vld [vmem:[%s382 + $0x68] sm:$0xf]
        %v600 = vld [vmem:[%s382 + $0x6c] sm:$0xf]
        %v601 = vld [vmem:[%s382 + $0x70] sm:$0xf]
        %v602 = vld [vmem:[%s382 + $0x74] sm:$0xf]
        %v603 = vld [vmem:[%s382 + $0x78] sm:$0xf]
        %v604 = vld [vmem:[%s382 + $0x7c] sm:$0xf]
        %v637 = vunpack.c.l.b16 %v541
        %v638 = vunpack.c.h.b16 %v541
        %v639 = vunpack.c.l.b16 %v542
        %v640 = vunpack.c.h.b16 %v542
        %v641 = vunpack.c.l.b16 %v543
        %v642 = vunpack.c.h.b16 %v543
        %v643 = vunpack.c.l.b16 %v544
        %v644 = vunpack.c.h.b16 %v544
        %v645 = vunpack.c.l.b16 %v545
        %v646 = vunpack.c.h.b16 %v545
        %v647 = vunpack.c.l.b16 %v546
        %v648 = vunpack.c.h.b16 %v546
        %v649 = vunpack.c.l.b16 %v547
        %v650 = vunpack.c.h.b16 %v547
        %v651 = vunpack.c.l.b16 %v548
        %v652 = vunpack.c.h.b16 %v548
        %v653 = vunpack.c.l.b16 %v549
        %v654 = vunpack.c.h.b16 %v549
        %v655 = vunpack.c.l.b16 %v550
        %v656 = vunpack.c.h.b16 %v550
        %v657 = vunpack.c.l.b16 %v551
        %v658 = vunpack.c.h.b16 %v551
        %v659 = vunpack.c.l.b16 %v552
        %v660 = vunpack.c.h.b16 %v552
        %v661 = vunpack.c.l.b16 %v553
        %v662 = vunpack.c.h.b16 %v553
        %v663 = vunpack.c.l.b16 %v554
        %v664 = vunpack.c.h.b16 %v554
        %v665 = vunpack.c.l.b16 %v555
        %v666 = vunpack.c.h.b16 %v555
        %v667 = vunpack.c.l.b16 %v556
        %v668 = vunpack.c.h.b16 %v556
        %v669 = vunpack.c.l.b16 %v557
        %v670 = vunpack.c.h.b16 %v557
        %v671 = vunpack.c.l.b16 %v558
        %v672 = vunpack.c.h.b16 %v558
        %v673 = vunpack.c.l.b16 %v559
        %v674 = vunpack.c.h.b16 %v559
        %v675 = vunpack.c.l.b16 %v560
        %v676 = vunpack.c.h.b16 %v560
        %v677 = vunpack.c.l.b16 %v561
        %v678 = vunpack.c.h.b16 %v561
        %v679 = vunpack.c.l.b16 %v562
        %v680 = vunpack.c.h.b16 %v562
        %v681 = vunpack.c.l.b16 %v563
        %v682 = vunpack.c.h.b16 %v563
        %v683 = vunpack.c.l.b16 %v564
        %v684 = vunpack.c.h.b16 %v564
        %v685 = vunpack.c.l.b16 %v565
        %v686 = vunpack.c.h.b16 %v565
        %v687 = vunpack.c.l.b16 %v566
        %v688 = vunpack.c.h.b16 %v566
        %v689 = vunpack.c.l.b16 %v567
        %v690 = vunpack.c.h.b16 %v567
        %v691 = vunpack.c.l.b16 %v568
        %v692 = vunpack.c.h.b16 %v568
        %v693 = vunpack.c.l.b16 %v569
        %v694 = vunpack.c.h.b16 %v569
        %v695 = vunpack.c.l.b16 %v570
        %v696 = vunpack.c.h.b16 %v570
        %v697 = vunpack.c.l.b16 %v571
        %v698 = vunpack.c.h.b16 %v571
        %v699 = vunpack.c.l.b16 %v572
        %v700 = vunpack.c.h.b16 %v572
        %v701 = vpack.c.b16 %v639, %v637
        %v702 = vpack.c.b16 %v640, %v638
        %v703 = vpack.c.b16 %v643, %v641
        %v704 = vpack.c.b16 %v644, %v642
        %v705 = vpack.c.b16 %v647, %v645
        %v706 = vpack.c.b16 %v648, %v646
        %v707 = vpack.c.b16 %v651, %v649
        %v708 = vpack.c.b16 %v652, %v650
        %v709 = vpack.c.b16 %v655, %v653
        %v710 = vpack.c.b16 %v656, %v654
        %v711 = vpack.c.b16 %v659, %v657
        %v712 = vpack.c.b16 %v660, %v658
        %v713 = vpack.c.b16 %v663, %v661
        %v714 = vpack.c.b16 %v664, %v662
        %v715 = vpack.c.b16 %v667, %v665
        %v716 = vpack.c.b16 %v668, %v666
        %v717 = vpack.c.b16 %v671, %v669
        %v718 = vpack.c.b16 %v672, %v670
        %v719 = vpack.c.b16 %v675, %v673
        %v720 = vpack.c.b16 %v676, %v674
        %v721 = vpack.c.b16 %v679, %v677
        %v722 = vpack.c.b16 %v680, %v678
        %v723 = vpack.c.b16 %v683, %v681
        %v724 = vpack.c.b16 %v684, %v682
        %v725 = vpack.c.b16 %v687, %v685
        %v726 = vpack.c.b16 %v688, %v686
        %v727 = vpack.c.b16 %v691, %v689
        %v728 = vpack.c.b16 %v692, %v690
        %v729 = vpack.c.b16 %v695, %v693
        %v730 = vpack.c.b16 %v696, %v694
        %v731 = vpack.c.b16 %v699, %v697
        %v732 = vpack.c.b16 %v700, %v698
        %v797 = vunpack.c.l.b16 %v573
        %v798 = vunpack.c.l.b16 %v574
        %v799 = vunpack.c.l.b16 %v575
        %v800 = vunpack.c.l.b16 %v576
        %v801 = vunpack.c.l.b16 %v577
        %v802 = vunpack.c.l.b16 %v578
        %v803 = vunpack.c.l.b16 %v579
        %v804 = vunpack.c.l.b16 %v580
        %v805 = vunpack.c.l.b16 %v581
        %v806 = vunpack.c.l.b16 %v582
        %v807 = vunpack.c.l.b16 %v583
        %v808 = vunpack.c.l.b16 %v584
        %v809 = vunpack.c.l.b16 %v585
        %v810 = vunpack.c.l.b16 %v586
        %v811 = vunpack.c.l.b16 %v587
        %v812 = vunpack.c.l.b16 %v588
        %v813 = vunpack.c.l.b16 %v589
        %v814 = vunpack.c.l.b16 %v590
        %v815 = vunpack.c.l.b16 %v591
        %v816 = vunpack.c.l.b16 %v592
        %v817 = vunpack.c.l.b16 %v593
        %v818 = vunpack.c.l.b16 %v594
        %v819 = vunpack.c.l.b16 %v595
        %v820 = vunpack.c.l.b16 %v596
        %v821 = vunpack.c.l.b16 %v597
        %v822 = vunpack.c.l.b16 %v598
        %v823 = vunpack.c.l.b16 %v599
        %v824 = vunpack.c.l.b16 %v600
        %v825 = vunpack.c.l.b16 %v601
        %v826 = vunpack.c.l.b16 %v602
        %v827 = vunpack.c.l.b16 %v603
        %v828 = vunpack.c.l.b16 %v604
        %v829 = vpack.c.b16 %v798, %v797
        %v830 = vpack.c.b16 %v800, %v799
        %v831 = vpack.c.b16 %v802, %v801
        %v832 = vpack.c.b16 %v804, %v803
        %v833 = vpack.c.b16 %v806, %v805
        %v834 = vpack.c.b16 %v808, %v807
        %v835 = vpack.c.b16 %v810, %v809
        %v836 = vpack.c.b16 %v812, %v811
        %v837 = vpack.c.b16 %v814, %v813
        %v838 = vpack.c.b16 %v816, %v815
        %v839 = vpack.c.b16 %v818, %v817
        %v840 = vpack.c.b16 %v820, %v819
        %v841 = vpack.c.b16 %v822, %v821
        %v842 = vpack.c.b16 %v824, %v823
        %v843 = vpack.c.b16 %v826, %v825
        %v844 = vpack.c.b16 %v828, %v827
        %861 = vmatpush.bf16.msra.mxu0 %v836
        %862 = vmatpush.bf16.msra.mxu0 %v835
        %863 = vmatpush.bf16.msra.mxu0 %v834
        %864 = vmatpush.bf16.msra.mxu0 %v833
        %865 = vmatpush.bf16.msra.mxu0 %v832
        %866 = vmatpush.bf16.msra.mxu0 %v831
        %867 = vmatpush.bf16.msra.mxu0 %v830
        %868 = vmatpush.bf16.msra.mxu0 %v829
        %869 = vmatmul.bf16.gmra.mxu0 %v701
        %v870 = vpop.f32.mrf.mxu0
        %v871 = vadd.f32 0.0, %v870
        %v872 = vpop.f32.mrf.mxu0
        %v873 = vadd.f32 0.0, %v872
        %874 = vmatmul.bf16.gmra.mxu0 %v703
        %v875 = vpop.f32.mrf.mxu0
        %v876 = vadd.f32 0.0, %v875
        %v877 = vpop.f32.mrf.mxu0
        %v878 = vadd.f32 0.0, %v877
        %879 = vmatmul.bf16.gmra.mxu0 %v705
        %v880 = vpop.f32.mrf.mxu0
        %v881 = vadd.f32 0.0, %v880
        %v882 = vpop.f32.mrf.mxu0
        %v883 = vadd.f32 0.0, %v882
        %884 = vmatmul.bf16.gmra.mxu0 %v707
        %v885 = vpop.f32.mrf.mxu0
        %v886 = vadd.f32 0.0, %v885
        %v887 = vpop.f32.mrf.mxu0
        %v888 = vadd.f32 0.0, %v887
        %889 = vmatmul.bf16.gmra.mxu0 %v709
        %v890 = vpop.f32.mrf.mxu0
        %v891 = vadd.f32 0.0, %v890
        %v892 = vpop.f32.mrf.mxu0
        %v893 = vadd.f32 0.0, %v892
        %894 = vmatmul.bf16.gmra.mxu0 %v711
        %v895 = vpop.f32.mrf.mxu0
        %v896 = vadd.f32 0.0, %v895
        %v897 = vpop.f32.mrf.mxu0
        %v898 = vadd.f32 0.0, %v897
        %899 = vmatmul.bf16.gmra.mxu0 %v713
        %v900 = vpop.f32.mrf.mxu0
        %v901 = vadd.f32 0.0, %v900
        %v902 = vpop.f32.mrf.mxu0
        %v903 = vadd.f32 0.0, %v902
        %904 = vmatmul.bf16.gmra.mxu0 %v715
        %v905 = vpop.f32.mrf.mxu0
        %v906 = vadd.f32 0.0, %v905
        %v907 = vpop.f32.mrf.mxu0
        %v908 = vadd.f32 0.0, %v907
        %909 = vmatmul.bf16.gmra.mxu0 %v717
        %v910 = vpop.f32.mrf.mxu0
        %v911 = vadd.f32 0.0, %v910
        %v912 = vpop.f32.mrf.mxu0
        %v913 = vadd.f32 0.0, %v912
        %914 = vmatmul.bf16.gmra.mxu0 %v719
        %v915 = vpop.f32.mrf.mxu0
        %v916 = vadd.f32 0.0, %v915
        %v917 = vpop.f32.mrf.mxu0
        %v918 = vadd.f32 0.0, %v917
        %919 = vmatmul.bf16.gmra.mxu0 %v721
        %v920 = vpop.f32.mrf.mxu0
        %v921 = vadd.f32 0.0, %v920
        %v922 = vpop.f32.mrf.mxu0
        %v923 = vadd.f32 0.0, %v922
        %924 = vmatmul.bf16.gmra.mxu0 %v723
        %v925 = vpop.f32.mrf.mxu0
        %v926 = vadd.f32 0.0, %v925
        %v927 = vpop.f32.mrf.mxu0
        %v928 = vadd.f32 0.0, %v927
        %929 = vmatmul.bf16.gmra.mxu0 %v725
        %v930 = vpop.f32.mrf.mxu0
        %v931 = vadd.f32 0.0, %v930
        %v932 = vpop.f32.mrf.mxu0
        %v933 = vadd.f32 0.0, %v932
        %934 = vmatmul.bf16.gmra.mxu0 %v727
        %v935 = vpop.f32.mrf.mxu0
        %v936 = vadd.f32 0.0, %v935
        %v937 = vpop.f32.mrf.mxu0
        %v938 = vadd.f32 0.0, %v937
        %939 = vmatmul.bf16.gmra.mxu0 %v729
        %v940 = vpop.f32.mrf.mxu0
        %v941 = vadd.f32 0.0, %v940
        %v942 = vpop.f32.mrf.mxu0
        %v943 = vadd.f32 0.0, %v942
        %944 = vmatmul.bf16.gmra.mxu0 %v731
        %v945 = vpop.f32.mrf.mxu0
        %v946 = vadd.f32 0.0, %v945
        %v947 = vpop.f32.mrf.mxu0
        %v948 = vadd.f32 0.0, %v947
        %949 = vdwg.mxu0
        %950 = vmatpush.bf16.msra.mxu0 %v844
        %951 = vmatpush.bf16.msra.mxu0 %v843
        %952 = vmatpush.bf16.msra.mxu0 %v842
        %953 = vmatpush.bf16.msra.mxu0 %v841
        %954 = vmatpush.bf16.msra.mxu0 %v840
        %955 = vmatpush.bf16.msra.mxu0 %v839
        %956 = vmatpush.bf16.msra.mxu0 %v838
        %957 = vmatpush.bf16.msra.mxu0 %v837
        %958 = vmatmul.bf16.gmra.mxu0 %v702
        %v959 = vpop.f32.mrf.mxu0
        %v960 = vadd.f32 %v871, %v959
        %v961 = vpop.f32.mrf.mxu0
        %v962 = vadd.f32 %v873, %v961
        %963 = vmatmul.bf16.gmra.mxu0 %v704
        %v964 = vpop.f32.mrf.mxu0
        %v965 = vadd.f32 %v876, %v964
        %v966 = vpop.f32.mrf.mxu0
        %v967 = vadd.f32 %v878, %v966
        %968 = vmatmul.bf16.gmra.mxu0 %v706
        %v969 = vpop.f32.mrf.mxu0
        %v970 = vadd.f32 %v881, %v969
        %v971 = vpop.f32.mrf.mxu0
        %v972 = vadd.f32 %v883, %v971
        %973 = vmatmul.bf16.gmra.mxu0 %v708
        %v974 = vpop.f32.mrf.mxu0
        %v975 = vadd.f32 %v886, %v974
        %v976 = vpop.f32.mrf.mxu0
        %v977 = vadd.f32 %v888, %v976
        %978 = vmatmul.bf16.gmra.mxu0 %v710
        %v979 = vpop.f32.mrf.mxu0
        %v980 = vadd.f32 %v891, %v979
        %v981 = vpop.f32.mrf.mxu0
        %v982 = vadd.f32 %v893, %v981
        %983 = vmatmul.bf16.gmra.mxu0 %v712
        %v984 = vpop.f32.mrf.mxu0
        %v985 = vadd.f32 %v896, %v984
        %v986 = vpop.f32.mrf.mxu0
        %v987 = vadd.f32 %v898, %v986
        %988 = vmatmul.bf16.gmra.mxu0 %v714
        %v989 = vpop.f32.mrf.mxu0
        %v990 = vadd.f32 %v901, %v989
        %v991 = vpop.f32.mrf.mxu0
        %v992 = vadd.f32 %v903, %v991
        %993 = vmatmul.bf16.gmra.mxu0 %v716
        %v994 = vpop.f32.mrf.mxu0
        %v995 = vadd.f32 %v906, %v994
        %v996 = vpop.f32.mrf.mxu0
        %v997 = vadd.f32 %v908, %v996
        %998 = vmatmul.bf16.gmra.mxu0 %v718
        %v999 = vpop.f32.mrf.mxu0
        %v1000 = vadd.f32 %v911, %v999
        %v1001 = vpop.f32.mrf.mxu0
        %v1002 = vadd.f32 %v913, %v1001
        %1003 = vmatmul.bf16.gmra.mxu0 %v720
        %v1004 = vpop.f32.mrf.mxu0
        %v1005 = vadd.f32 %v916, %v1004
        %v1006 = vpop.f32.mrf.mxu0
        %v1007 = vadd.f32 %v918, %v1006
        %1008 = vmatmul.bf16.gmra.mxu0 %v722
        %v1009 = vpop.f32.mrf.mxu0
        %v1010 = vadd.f32 %v921, %v1009
        %v1011 = vpop.f32.mrf.mxu0
        %v1012 = vadd.f32 %v923, %v1011
        %1013 = vmatmul.bf16.gmra.mxu0 %v724
        %v1014 = vpop.f32.mrf.mxu0
        %v1015 = vadd.f32 %v926, %v1014
        %v1016 = vpop.f32.mrf.mxu0
        %v1017 = vadd.f32 %v928, %v1016
        %1018 = vmatmul.bf16.gmra.mxu0 %v726
        %v1019 = vpop.f32.mrf.mxu0
        %v1020 = vadd.f32 %v931, %v1019
        %v1021 = vpop.f32.mrf.mxu0
        %v1022 = vadd.f32 %v933, %v1021
        %1023 = vmatmul.bf16.gmra.mxu0 %v728
        %v1024 = vpop.f32.mrf.mxu0
        %v1025 = vadd.f32 %v936, %v1024
        %v1026 = vpop.f32.mrf.mxu0
        %v1027 = vadd.f32 %v938, %v1026
        %1028 = vmatmul.bf16.gmra.mxu0 %v730
        %v1029 = vpop.f32.mrf.mxu0
        %v1030 = vadd.f32 %v941, %v1029
        %v1031 = vpop.f32.mrf.mxu0
        %v1032 = vadd.f32 %v943, %v1031
        %1033 = vmatmul.bf16.gmra.mxu0 %v732
        %v1034 = vpop.f32.mrf.mxu0
        %v1035 = vadd.f32 %v946, %v1034
        %v1036 = vpop.f32.mrf.mxu0
        %v1037 = vadd.f32 %v948, %v1036
        %1038 = vdwg.mxu0
        %v1039 = vadd.f32 %v509, %v960
        %v1040 = vadd.f32 %v510, %v962
        %v1041 = vadd.f32 %v511, %v965
        %v1042 = vadd.f32 %v512, %v967
        %v1043 = vadd.f32 %v513, %v970
        %v1044 = vadd.f32 %v514, %v972
        %v1045 = vadd.f32 %v515, %v975
        %v1046 = vadd.f32 %v516, %v977
        %v1047 = vadd.f32 %v517, %v980
        %v1048 = vadd.f32 %v518, %v982
        %v1049 = vadd.f32 %v519, %v985
        %v1050 = vadd.f32 %v520, %v987
        %v1051 = vadd.f32 %v521, %v990
        %v1052 = vadd.f32 %v522, %v992
        %v1053 = vadd.f32 %v523, %v995
        %v1054 = vadd.f32 %v524, %v997
        %v1055 = vadd.f32 %v525, %v1000
        %v1056 = vadd.f32 %v526, %v1002
        %v1057 = vadd.f32 %v527, %v1005
        %v1058 = vadd.f32 %v528, %v1007
        %v1059 = vadd.f32 %v529, %v1010
        %v1060 = vadd.f32 %v530, %v1012
        %v1061 = vadd.f32 %v531, %v1015
        %v1062 = vadd.f32 %v532, %v1017
        %v1063 = vadd.f32 %v533, %v1020
        %v1064 = vadd.f32 %v534, %v1022
        %v1065 = vadd.f32 %v535, %v1025
        %v1066 = vadd.f32 %v536, %v1027
        %v1067 = vadd.f32 %v537, %v1030
        %v1068 = vadd.f32 %v538, %v1032
        %v1069 = vadd.f32 %v539, %v1035
        %v1070 = vadd.f32 %v540, %v1037
        %1071 = vst [vmem:[#allocation2] sm:$0xff] %v1039
        %1072 = vst [vmem:[#allocation2 + $0x8] sm:$0xff] %v1040
        %1073 = vst [vmem:[#allocation2 + $0x10] sm:$0xff] %v1041
        %1074 = vst [vmem:[#allocation2 + $0x18] sm:$0xff] %v1042
        %1075 = vst [vmem:[#allocation2 + $0x20] sm:$0xff] %v1043
        %1076 = vst [vmem:[#allocation2 + $0x28] sm:$0xff] %v1044
        %1077 = vst [vmem:[#allocation2 + $0x30] sm:$0xff] %v1045
        %1078 = vst [vmem:[#allocation2 + $0x38] sm:$0xff] %v1046
        %1079 = vst [vmem:[#allocation2 + $0x40] sm:$0xff] %v1047
        %1080 = vst [vmem:[#allocation2 + $0x48] sm:$0xff] %v1048
        %1081 = vst [vmem:[#allocation2 + $0x50] sm:$0xff] %v1049
        %1082 = vst [vmem:[#allocation2 + $0x58] sm:$0xff] %v1050
        %1083 = vst [vmem:[#allocation2 + $0x60] sm:$0xff] %v1051
        %1084 = vst [vmem:[#allocation2 + $0x68] sm:$0xff] %v1052
        %1085 = vst [vmem:[#allocation2 + $0x70] sm:$0xff] %v1053
        %1086 = vst [vmem:[#allocation2 + $0x78] sm:$0xff] %v1054
        %1087 = vst [vmem:[#allocation2 + $0x80] sm:$0xff] %v1055
        %1088 = vst [vmem:[#allocation2 + $0x88] sm:$0xff] %v1056
        %1089 = vst [vmem:[#allocation2 + $0x90] sm:$0xff] %v1057
        %1090 = vst [vmem:[#allocation2 + $0x98] sm:$0xff] %v1058
        %1091 = vst [vmem:[#allocation2 + $0xa0] sm:$0xff] %v1059
        %1092 = vst [vmem:[#allocation2 + $0xa8] sm:$0xff] %v1060
        %1093 = vst [vmem:[#allocation2 + $0xb0] sm:$0xff] %v1061
        %1094 = vst [vmem:[#allocation2 + $0xb8] sm:$0xff] %v1062
        %1095 = vst [vmem:[#allocation2 + $0xc0] sm:$0xff] %v1063
        %1096 = vst [vmem:[#allocation2 + $0xc8] sm:$0xff] %v1064
        %1097 = vst [vmem:[#allocation2 + $0xd0] sm:$0xff] %v1065
        %1098 = vst [vmem:[#allocation2 + $0xd8] sm:$0xff] %v1066
        %1099 = vst [vmem:[#allocation2 + $0xe0] sm:$0xff] %v1067
        %1100 = vst [vmem:[#allocation2 + $0xe8] sm:$0xff] %v1068
        %1101 = vst [vmem:[#allocation2 + $0xf0] sm:$0xff] %v1069
        %1102 = vst [vmem:[#allocation2 + $0xf8] sm:$0xff] %v1070
        // Predicated region
        $region57: #{tpu_custom_call.1} parent=35 // pred_check
          %p1103 = pneg %p473
        $region58: #{tpu_custom_call.1} parent=35 // pred_check_branch
          %1105 = sbr.rel (%p1103) target = $region60
        $region59: #{tpu_custom_call.1} parent=35 // pred_region
          %v1106 = vld [vmem:[#allocation2] sm:$0xff]
          %v1107 = vld [vmem:[#allocation2 + $0x8] sm:$0xff]
          %v1108 = vld [vmem:[#allocation2 + $0x10] sm:$0xff]
          %v1109 = vld [vmem:[#allocation2 + $0x18] sm:$0xff]
          %v1110 = vld [vmem:[#allocation2 + $0x20] sm:$0xff]
          %v1111 = vld [vmem:[#allocation2 + $0x28] sm:$0xff]
          %v1112 = vld [vmem:[#allocation2 + $0x30] sm:$0xff]
          %v1113 = vld [vmem:[#allocation2 + $0x38] sm:$0xff]
          %v1114 = vld [vmem:[#allocation2 + $0x40] sm:$0xff]
          %v1115 = vld [vmem:[#allocation2 + $0x48] sm:$0xff]
          %v1116 = vld [vmem:[#allocation2 + $0x50] sm:$0xff]
          %v1117 = vld [vmem:[#allocation2 + $0x58] sm:$0xff]
          %v1118 = vld [vmem:[#allocation2 + $0x60] sm:$0xff]
          %v1119 = vld [vmem:[#allocation2 + $0x68] sm:$0xff]
          %v1120 = vld [vmem:[#allocation2 + $0x70] sm:$0xff]
          %v1121 = vld [vmem:[#allocation2 + $0x78] sm:$0xff]
          %v1122 = vld [vmem:[#allocation2 + $0x80] sm:$0xff]
          %v1123 = vld [vmem:[#allocation2 + $0x88] sm:$0xff]
          %v1124 = vld [vmem:[#allocation2 + $0x90] sm:$0xff]
          %v1125 = vld [vmem:[#allocation2 + $0x98] sm:$0xff]
          %v1126 = vld [vmem:[#allocation2 + $0xa0] sm:$0xff]
          %v1127 = vld [vmem:[#allocation2 + $0xa8] sm:$0xff]
          %v1128 = vld [vmem:[#allocation2 + $0xb0] sm:$0xff]
          %v1129 = vld [vmem:[#allocation2 + $0xb8] sm:$0xff]
          %v1130 = vld [vmem:[#allocation2 + $0xc0] sm:$0xff]
          %v1131 = vld [vmem:[#allocation2 + $0xc8] sm:$0xff]
          %v1132 = vld [vmem:[#allocation2 + $0xd0] sm:$0xff]
          %v1133 = vld [vmem:[#allocation2 + $0xd8] sm:$0xff]
          %v1134 = vld [vmem:[#allocation2 + $0xe0] sm:$0xff]
          %v1135 = vld [vmem:[#allocation2 + $0xe8] sm:$0xff]
          %v1136 = vld [vmem:[#allocation2 + $0xf0] sm:$0xff]
          %v1137 = vld [vmem:[#allocation2 + $0xf8] sm:$0xff]
          %v1138 = vld [vmem:[%s392] sm:$0xff]
          %v1139 = vld [vmem:[%s392 + $0x8] sm:$0xff]
          %v1140 = vld [vmem:[%s392 + $0x10] sm:$0xff]
          %v1141 = vld [vmem:[%s392 + $0x18] sm:$0xff]
          %v1142 = vld [vmem:[%s392 + $0x20] sm:$0xff]
          %v1143 = vld [vmem:[%s392 + $0x28] sm:$0xff]
          %v1144 = vld [vmem:[%s392 + $0x30] sm:$0xff]
          %v1145 = vld [vmem:[%s392 + $0x38] sm:$0xff]
          %v1146 = vld [vmem:[%s392 + $0x40] sm:$0xff]
          %v1147 = vld [vmem:[%s392 + $0x48] sm:$0xff]
          %v1148 = vld [vmem:[%s392 + $0x50] sm:$0xff]
          %v1149 = vld [vmem:[%s392 + $0x58] sm:$0xff]
          %v1150 = vld [vmem:[%s392 + $0x60] sm:$0xff]
          %v1151 = vld [vmem:[%s392 + $0x68] sm:$0xff]
          %v1152 = vld [vmem:[%s392 + $0x70] sm:$0xff]
          %v1153 = vld [vmem:[%s392 + $0x78] sm:$0xff]
          %v1154 = vld [vmem:[%s392 + $0x80] sm:$0xff]
          %v1155 = vld [vmem:[%s392 + $0x88] sm:$0xff]
          %v1156 = vld [vmem:[%s392 + $0x90] sm:$0xff]
          %v1157 = vld [vmem:[%s392 + $0x98] sm:$0xff]
          %v1158 = vld [vmem:[%s392 + $0xa0] sm:$0xff]
          %v1159 = vld [vmem:[%s392 + $0xa8] sm:$0xff]
          %v1160 = vld [vmem:[%s392 + $0xb0] sm:$0xff]
          %v1161 = vld [vmem:[%s392 + $0xb8] sm:$0xff]
          %v1162 = vld [vmem:[%s392 + $0xc0] sm:$0xff]
          %v1163 = vld [vmem:[%s392 + $0xc8] sm:$0xff]
          %v1164 = vld [vmem:[%s392 + $0xd0] sm:$0xff]
          %v1165 = vld [vmem:[%s392 + $0xd8] sm:$0xff]
          %v1166 = vld [vmem:[%s392 + $0xe0] sm:$0xff]
          %v1167 = vld [vmem:[%s392 + $0xe8] sm:$0xff]
          %v1168 = vld [vmem:[%s392 + $0xf0] sm:$0xff]
          %v1169 = vld [vmem:[%s392 + $0xf8] sm:$0xff]
          %v1170 = vld [vmem:[%s402] sm:$0xff]
          %v1171 = vld [vmem:[%s402 + $0x8] sm:$0xff]
          %v1172 = vld [vmem:[%s402 + $0x10] sm:$0xff]
          %v1173 = vld [vmem:[%s402 + $0x18] sm:$0xff]
          %v1174 = vld [vmem:[%s402 + $0x20] sm:$0xff]
          %v1175 = vld [vmem:[%s402 + $0x28] sm:$0xff]
          %v1176 = vld [vmem:[%s402 + $0x30] sm:$0xff]
          %v1177 = vld [vmem:[%s402 + $0x38] sm:$0xff]
          %v1178 = vld [vmem:[%s402 + $0x40] sm:$0xff]
          %v1179 = vld [vmem:[%s402 + $0x48] sm:$0xff]
          %v1180 = vld [vmem:[%s402 + $0x50] sm:$0xff]
          %v1181 = vld [vmem:[%s402 + $0x58] sm:$0xff]
          %v1182 = vld [vmem:[%s402 + $0x60] sm:$0xff]
          %v1183 = vld [vmem:[%s402 + $0x68] sm:$0xff]
          %v1184 = vld [vmem:[%s402 + $0x70] sm:$0xff]
          %v1185 = vld [vmem:[%s402 + $0x78] sm:$0xff]
          %v1186 = vld [vmem:[%s402 + $0x80] sm:$0xff]
          %v1187 = vld [vmem:[%s402 + $0x88] sm:$0xff]
          %v1188 = vld [vmem:[%s402 + $0x90] sm:$0xff]
          %v1189 = vld [vmem:[%s402 + $0x98] sm:$0xff]
          %v1190 = vld [vmem:[%s402 + $0xa0] sm:$0xff]
          %v1191 = vld [vmem:[%s402 + $0xa8] sm:$0xff]
          %v1192 = vld [vmem:[%s402 + $0xb0] sm:$0xff]
          %v1193 = vld [vmem:[%s402 + $0xb8] sm:$0xff]
          %v1194 = vld [vmem:[%s402 + $0xc0] sm:$0xff]
          %v1195 = vld [vmem:[%s402 + $0xc8] sm:$0xff]
          %v1196 = vld [vmem:[%s402 + $0xd0] sm:$0xff]
          %v1197 = vld [vmem:[%s402 + $0xd8] sm:$0xff]
          %v1198 = vld [vmem:[%s402 + $0xe0] sm:$0xff]
          %v1199 = vld [vmem:[%s402 + $0xe8] sm:$0xff]
          %v1200 = vld [vmem:[%s402 + $0xf0] sm:$0xff]
          %v1201 = vld [vmem:[%s402 + $0xf8] sm:$0xff]
          %p1202 = scmp.lt.s32.totalorder %s33, 2
          // Predicated region
          $region61: #{tpu_custom_call.1} parent=59 // pred_check
            %p1203 = pneg %p1202
          $region62: #{tpu_custom_call.1} parent=59 // pred_check_branch
            %1205 = sbr.rel (%p1203) target = $region64
          $region63: #{tpu_custom_call.1} parent=59 // pred_region
            %v1206 = vmul.f32 %v1106, %v1138
            %v1207 = vmul.f32 %v1107, %v1139
            %v1208 = vmul.f32 %v1108, %v1140
            %v1209 = vmul.f32 %v1109, %v1141
            %v1210 = vmul.f32 %v1110, %v1142
            %v1211 = vmul.f32 %v1111, %v1143
            %v1212 = vmul.f32 %v1112, %v1144
            %v1213 = vmul.f32 %v1113, %v1145
            %v1214 = vmul.f32 %v1114, %v1146
            %v1215 = vmul.f32 %v1115, %v1147
            %v1216 = vmul.f32 %v1116, %v1148
            %v1217 = vmul.f32 %v1117, %v1149
            %v1218 = vmul.f32 %v1118, %v1150
            %v1219 = vmul.f32 %v1119, %v1151
            %v1220 = vmul.f32 %v1120, %v1152
            %v1221 = vmul.f32 %v1121, %v1153
            %v1222 = vmul.f32 %v1122, %v1154
            %v1223 = vmul.f32 %v1123, %v1155
            %v1224 = vmul.f32 %v1124, %v1156
            %v1225 = vmul.f32 %v1125, %v1157
            %v1226 = vmul.f32 %v1126, %v1158
            %v1227 = vmul.f32 %v1127, %v1159
            %v1228 = vmul.f32 %v1128, %v1160
            %v1229 = vmul.f32 %v1129, %v1161
            %v1230 = vmul.f32 %v1130, %v1162
            %v1231 = vmul.f32 %v1131, %v1163
            %v1232 = vmul.f32 %v1132, %v1164
            %v1233 = vmul.f32 %v1133, %v1165
            %v1234 = vmul.f32 %v1134, %v1166
            %v1235 = vmul.f32 %v1135, %v1167
            %v1236 = vmul.f32 %v1136, %v1168
            %v1237 = vmul.f32 %v1137, %v1169
            %1270 = vrot.lane.b32.xlu0 %v1170, 64
            %v1271 = vpop.permute.xlu0 %1270
            %1272 = vrot.lane.b32.xlu0 %v1171, 64
            %v1273 = vpop.permute.xlu0 %1272
            %1274 = vrot.lane.b32.xlu0 %v1172, 64
            %v1275 = vpop.permute.xlu0 %1274
            %1276 = vrot.lane.b32.xlu0 %v1173, 64
            %v1277 = vpop.permute.xlu0 %1276
            %1278 = vrot.lane.b32.xlu0 %v1174, 64
            %v1279 = vpop.permute.xlu0 %1278
            %1280 = vrot.lane.b32.xlu0 %v1175, 64
            %v1281 = vpop.permute.xlu0 %1280
            %1282 = vrot.lane.b32.xlu0 %v1176, 64
            %v1283 = vpop.permute.xlu0 %1282
            %1284 = vrot.lane.b32.xlu0 %v1177, 64
            %v1285 = vpop.permute.xlu0 %1284
            %1286 = vrot.lane.b32.xlu0 %v1178, 64
            %v1287 = vpop.permute.xlu0 %1286
            %1288 = vrot.lane.b32.xlu0 %v1179, 64
            %v1289 = vpop.permute.xlu0 %1288
            %1290 = vrot.lane.b32.xlu0 %v1180, 64
            %v1291 = vpop.permute.xlu0 %1290
            %1292 = vrot.lane.b32.xlu0 %v1181, 64
            %v1293 = vpop.permute.xlu0 %1292
            %1294 = vrot.lane.b32.xlu0 %v1182, 64
            %v1295 = vpop.permute.xlu0 %1294
            %1296 = vrot.lane.b32.xlu0 %v1183, 64
            %v1297 = vpop.permute.xlu0 %1296
            %1298 = vrot.lane.b32.xlu0 %v1184, 64
            %v1299 = vpop.permute.xlu0 %1298
            %1300 = vrot.lane.b32.xlu0 %v1185, 64
            %v1301 = vpop.permute.xlu0 %1300
            %1302 = vrot.lane.b32.xlu0 %v1186, 64
            %v1303 = vpop.permute.xlu0 %1302
            %1304 = vrot.lane.b32.xlu0 %v1187, 64
            %v1305 = vpop.permute.xlu0 %1304
            %1306 = vrot.lane.b32.xlu0 %v1188, 64
            %v1307 = vpop.permute.xlu0 %1306
            %1308 = vrot.lane.b32.xlu0 %v1189, 64
            %v1309 = vpop.permute.xlu0 %1308
            %1310 = vrot.lane.b32.xlu0 %v1190, 64
            %v1311 = vpop.permute.xlu0 %1310
            %1312 = vrot.lane.b32.xlu0 %v1191, 64
            %v1313 = vpop.permute.xlu0 %1312
            %1314 = vrot.lane.b32.xlu0 %v1192, 64
            %v1315 = vpop.permute.xlu0 %1314
            %1316 = vrot.lane.b32.xlu0 %v1193, 64
            %v1317 = vpop.permute.xlu0 %1316
            %1318 = vrot.lane.b32.xlu0 %v1194, 64
            %v1319 = vpop.permute.xlu0 %1318
            %1320 = vrot.lane.b32.xlu0 %v1195, 64
            %v1321 = vpop.permute.xlu0 %1320
            %1322 = vrot.lane.b32.xlu0 %v1196, 64
            %v1323 = vpop.permute.xlu0 %1322
            %1324 = vrot.lane.b32.xlu0 %v1197, 64
            %v1325 = vpop.permute.xlu0 %1324
            %1326 = vrot.lane.b32.xlu0 %v1198, 64
            %v1327 = vpop.permute.xlu0 %1326
            %1328 = vrot.lane.b32.xlu0 %v1199, 64
            %v1329 = vpop.permute.xlu0 %1328
            %1330 = vrot.lane.b32.xlu0 %v1200, 64
            %v1331 = vpop.permute.xlu0 %1330
            %1332 = vrot.lane.b32.xlu0 %v1201, 64
            %v1333 = vpop.permute.xlu0 %1332
            %v1366 = vmul.f32 %v1106, %v1271
            %v1367 = vmul.f32 %v1107, %v1273
            %v1368 = vmul.f32 %v1108, %v1275
            %v1369 = vmul.f32 %v1109, %v1277
            %v1370 = vmul.f32 %v1110, %v1279
            %v1371 = vmul.f32 %v1111, %v1281
            %v1372 = vmul.f32 %v1112, %v1283
            %v1373 = vmul.f32 %v1113, %v1285
            %v1374 = vmul.f32 %v1114, %v1287
            %v1375 = vmul.f32 %v1115, %v1289
            %v1376 = vmul.f32 %v1116, %v1291
            %v1377 = vmul.f32 %v1117, %v1293
            %v1378 = vmul.f32 %v1118, %v1295
            %v1379 = vmul.f32 %v1119, %v1297
            %v1380 = vmul.f32 %v1120, %v1299
            %v1381 = vmul.f32 %v1121, %v1301
            %v1382 = vmul.f32 %v1122, %v1303
            %v1383 = vmul.f32 %v1123, %v1305
            %v1384 = vmul.f32 %v1124, %v1307
            %v1385 = vmul.f32 %v1125, %v1309
            %v1386 = vmul.f32 %v1126, %v1311
            %v1387 = vmul.f32 %v1127, %v1313
            %v1388 = vmul.f32 %v1128, %v1315
            %v1389 = vmul.f32 %v1129, %v1317
            %v1390 = vmul.f32 %v1130, %v1319
            %v1391 = vmul.f32 %v1131, %v1321
            %v1392 = vmul.f32 %v1132, %v1323
            %v1393 = vmul.f32 %v1133, %v1325
            %v1394 = vmul.f32 %v1134, %v1327
            %v1395 = vmul.f32 %v1135, %v1329
            %v1396 = vmul.f32 %v1136, %v1331
            %v1397 = vmul.f32 %v1137, %v1333
            %1430 = vrot.lane.b32.xlu0 %v1366, 64
            %v1431 = vpop.permute.xlu0 %1430
            %1432 = vrot.lane.b32.xlu0 %v1367, 64
            %v1433 = vpop.permute.xlu0 %1432
            %1434 = vrot.lane.b32.xlu0 %v1368, 64
            %v1435 = vpop.permute.xlu0 %1434
            %1436 = vrot.lane.b32.xlu0 %v1369, 64
            %v1437 = vpop.permute.xlu0 %1436
            %1438 = vrot.lane.b32.xlu0 %v1370, 64
            %v1439 = vpop.permute.xlu0 %1438
            %1440 = vrot.lane.b32.xlu0 %v1371, 64
            %v1441 = vpop.permute.xlu0 %1440
            %1442 = vrot.lane.b32.xlu0 %v1372, 64
            %v1443 = vpop.permute.xlu0 %1442
            %1444 = vrot.lane.b32.xlu0 %v1373, 64
            %v1445 = vpop.permute.xlu0 %1444
            %1446 = vrot.lane.b32.xlu0 %v1374, 64
            %v1447 = vpop.permute.xlu0 %1446
            %1448 = vrot.lane.b32.xlu0 %v1375, 64
            %v1449 = vpop.permute.xlu0 %1448
            %1450 = vrot.lane.b32.xlu0 %v1376, 64
            %v1451 = vpop.permute.xlu0 %1450
            %1452 = vrot.lane.b32.xlu0 %v1377, 64
            %v1453 = vpop.permute.xlu0 %1452
            %1454 = vrot.lane.b32.xlu0 %v1378, 64
            %v1455 = vpop.permute.xlu0 %1454
            %1456 = vrot.lane.b32.xlu0 %v1379, 64
            %v1457 = vpop.permute.xlu0 %1456
            %1458 = vrot.lane.b32.xlu0 %v1380, 64
            %v1459 = vpop.permute.xlu0 %1458
            %1460 = vrot.lane.b32.xlu0 %v1381, 64
            %v1461 = vpop.permute.xlu0 %1460
            %1462 = vrot.lane.b32.xlu0 %v1382, 64
            %v1463 = vpop.permute.xlu0 %1462
            %1464 = vrot.lane.b32.xlu0 %v1383, 64
            %v1465 = vpop.permute.xlu0 %1464
            %1466 = vrot.lane.b32.xlu0 %v1384, 64
            %v1467 = vpop.permute.xlu0 %1466
            %1468 = vrot.lane.b32.xlu0 %v1385, 64
            %v1469 = vpop.permute.xlu0 %1468
            %1470 = vrot.lane.b32.xlu0 %v1386, 64
            %v1471 = vpop.permute.xlu0 %1470
            %1472 = vrot.lane.b32.xlu0 %v1387, 64
            %v1473 = vpop.permute.xlu0 %1472
            %1474 = vrot.lane.b32.xlu0 %v1388, 64
            %v1475 = vpop.permute.xlu0 %1474
            %1476 = vrot.lane.b32.xlu0 %v1389, 64
            %v1477 = vpop.permute.xlu0 %1476
            %1478 = vrot.lane.b32.xlu0 %v1390, 64
            %v1479 = vpop.permute.xlu0 %1478
            %1480 = vrot.lane.b32.xlu0 %v1391, 64
            %v1481 = vpop.permute.xlu0 %1480
            %1482 = vrot.lane.b32.xlu0 %v1392, 64
            %v1483 = vpop.permute.xlu0 %1482
            %1484 = vrot.lane.b32.xlu0 %v1393, 64
            %v1485 = vpop.permute.xlu0 %1484
            %1486 = vrot.lane.b32.xlu0 %v1394, 64
            %v1487 = vpop.permute.xlu0 %1486
            %1488 = vrot.lane.b32.xlu0 %v1395, 64
            %v1489 = vpop.permute.xlu0 %1488
            %1490 = vrot.lane.b32.xlu0 %v1396, 64
            %v1491 = vpop.permute.xlu0 %1490
            %1492 = vrot.lane.b32.xlu0 %v1397, 64
            %v1493 = vpop.permute.xlu0 %1492
            %v1526 = vsub.f32 %v1206, %v1431
            %v1527 = vsub.f32 %v1207, %v1433
            %v1528 = vsub.f32 %v1208, %v1435
            %v1529 = vsub.f32 %v1209, %v1437
            %v1530 = vsub.f32 %v1210, %v1439
            %v1531 = vsub.f32 %v1211, %v1441
            %v1532 = vsub.f32 %v1212, %v1443
            %v1533 = vsub.f32 %v1213, %v1445
            %v1534 = vsub.f32 %v1214, %v1447
            %v1535 = vsub.f32 %v1215, %v1449
            %v1536 = vsub.f32 %v1216, %v1451
            %v1537 = vsub.f32 %v1217, %v1453
            %v1538 = vsub.f32 %v1218, %v1455
            %v1539 = vsub.f32 %v1219, %v1457
            %v1540 = vsub.f32 %v1220, %v1459
            %v1541 = vsub.f32 %v1221, %v1461
            %v1542 = vsub.f32 %v1222, %v1463
            %v1543 = vsub.f32 %v1223, %v1465
            %v1544 = vsub.f32 %v1224, %v1467
            %v1545 = vsub.f32 %v1225, %v1469
            %v1546 = vsub.f32 %v1226, %v1471
            %v1547 = vsub.f32 %v1227, %v1473
            %v1548 = vsub.f32 %v1228, %v1475
            %v1549 = vsub.f32 %v1229, %v1477
            %v1550 = vsub.f32 %v1230, %v1479
            %v1551 = vsub.f32 %v1231, %v1481
            %v1552 = vsub.f32 %v1232, %v1483
            %v1553 = vsub.f32 %v1233, %v1485
            %v1554 = vsub.f32 %v1234, %v1487
            %v1555 = vsub.f32 %v1235, %v1489
            %v1556 = vsub.f32 %v1236, %v1491
            %v1557 = vsub.f32 %v1237, %v1493
            %v1558 = vmul.f32 %v1526, 0.088388346
            %v1559 = vmul.f32 %v1527, 0.088388346
            %v1560 = vmul.f32 %v1528, 0.088388346
            %v1561 = vmul.f32 %v1529, 0.088388346
            %v1562 = vmul.f32 %v1530, 0.088388346
            %v1563 = vmul.f32 %v1531, 0.088388346
            %v1564 = vmul.f32 %v1532, 0.088388346
            %v1565 = vmul.f32 %v1533, 0.088388346
            %v1566 = vmul.f32 %v1534, 0.088388346
            %v1567 = vmul.f32 %v1535, 0.088388346
            %v1568 = vmul.f32 %v1536, 0.088388346
            %v1569 = vmul.f32 %v1537, 0.088388346
            %v1570 = vmul.f32 %v1538, 0.088388346
            %v1571 = vmul.f32 %v1539, 0.088388346
            %v1572 = vmul.f32 %v1540, 0.088388346
            %v1573 = vmul.f32 %v1541, 0.088388346
            %v1574 = vmul.f32 %v1542, 0.088388346
            %v1575 = vmul.f32 %v1543, 0.088388346
            %v1576 = vmul.f32 %v1544, 0.088388346
            %v1577 = vmul.f32 %v1545, 0.088388346
            %v1578 = vmul.f32 %v1546, 0.088388346
            %v1579 = vmul.f32 %v1547, 0.088388346
            %v1580 = vmul.f32 %v1548, 0.088388346
            %v1581 = vmul.f32 %v1549, 0.088388346
            %v1582 = vmul.f32 %v1550, 0.088388346
            %v1583 = vmul.f32 %v1551, 0.088388346
            %v1584 = vmul.f32 %v1552, 0.088388346
            %v1585 = vmul.f32 %v1553, 0.088388346
            %v1586 = vmul.f32 %v1554, 0.088388346
            %v1587 = vmul.f32 %v1555, 0.088388346
            %v1588 = vmul.f32 %v1556, 0.088388346
            %v1589 = vmul.f32 %v1557, 0.088388346
            %v1590 = vpack.c.bf16 %v1558, %v1558
            %v1591 = vpack.c.bf16 %v1559, %v1559
            %v1592 = vpack.c.bf16 %v1560, %v1560
            %v1593 = vpack.c.bf16 %v1561, %v1561
            %v1594 = vpack.c.bf16 %v1562, %v1562
            %v1595 = vpack.c.bf16 %v1563, %v1563
            %v1596 = vpack.c.bf16 %v1564, %v1564
            %v1597 = vpack.c.bf16 %v1565, %v1565
            %v1598 = vpack.c.bf16 %v1566, %v1566
            %v1599 = vpack.c.bf16 %v1567, %v1567
            %v1600 = vpack.c.bf16 %v1568, %v1568
            %v1601 = vpack.c.bf16 %v1569, %v1569
            %v1602 = vpack.c.bf16 %v1570, %v1570
            %v1603 = vpack.c.bf16 %v1571, %v1571
            %v1604 = vpack.c.bf16 %v1572, %v1572
            %v1605 = vpack.c.bf16 %v1573, %v1573
            %v1606 = vpack.c.bf16 %v1574, %v1574
            %v1607 = vpack.c.bf16 %v1575, %v1575
            %v1608 = vpack.c.bf16 %v1576, %v1576
            %v1609 = vpack.c.bf16 %v1577, %v1577
            %v1610 = vpack.c.bf16 %v1578, %v1578
            %v1611 = vpack.c.bf16 %v1579, %v1579
            %v1612 = vpack.c.bf16 %v1580, %v1580
            %v1613 = vpack.c.bf16 %v1581, %v1581
            %v1614 = vpack.c.bf16 %v1582, %v1582
            %v1615 = vpack.c.bf16 %v1583, %v1583
            %v1616 = vpack.c.bf16 %v1584, %v1584
            %v1617 = vpack.c.bf16 %v1585, %v1585
            %v1618 = vpack.c.bf16 %v1586, %v1586
            %v1619 = vpack.c.bf16 %v1587, %v1587
            %v1620 = vpack.c.bf16 %v1588, %v1588
            %v1621 = vpack.c.bf16 %v1589, %v1589
            %vm1622 = vcmask 519168
            %1623 = vst.msk [vmem:[%s442] sm:$0xf] %vm1622, %v1590
            %1624 = vst.msk [vmem:[%s442 + $0x4] sm:$0xf] %vm1622, %v1591
            %1625 = vst.msk [vmem:[%s442 + $0x8] sm:$0xf] %vm1622, %v1592
            %1626 = vst.msk [vmem:[%s442 + $0xc] sm:$0xf] %vm1622, %v1593
            %1627 = vst.msk [vmem:[%s442 + $0x10] sm:$0xf] %vm1622, %v1594
            %1628 = vst.msk [vmem:[%s442 + $0x14] sm:$0xf] %vm1622, %v1595
            %1629 = vst.msk [vmem:[%s442 + $0x18] sm:$0xf] %vm1622, %v1596
            %1630 = vst.msk [vmem:[%s442 + $0x1c] sm:$0xf] %vm1622, %v1597
            %1631 = vst.msk [vmem:[%s442 + $0x20] sm:$0xf] %vm1622, %v1598
            %1632 = vst.msk [vmem:[%s442 + $0x24] sm:$0xf] %vm1622, %v1599
            %1633 = vst.msk [vmem:[%s442 + $0x28] sm:$0xf] %vm1622, %v1600
            %1634 = vst.msk [vmem:[%s442 + $0x2c] sm:$0xf] %vm1622, %v1601
            %1635 = vst.msk [vmem:[%s442 + $0x30] sm:$0xf] %vm1622, %v1602
            %1636 = vst.msk [vmem:[%s442 + $0x34] sm:$0xf] %vm1622, %v1603
            %1637 = vst.msk [vmem:[%s442 + $0x38] sm:$0xf] %vm1622, %v1604
            %1638 = vst.msk [vmem:[%s442 + $0x3c] sm:$0xf] %vm1622, %v1605
            %1639 = vst.msk [vmem:[%s442 + $0x40] sm:$0xf] %vm1622, %v1606
            %1640 = vst.msk [vmem:[%s442 + $0x44] sm:$0xf] %vm1622, %v1607
            %1641 = vst.msk [vmem:[%s442 + $0x48] sm:$0xf] %vm1622, %v1608
            %1642 = vst.msk [vmem:[%s442 + $0x4c] sm:$0xf] %vm1622, %v1609
            %1643 = vst.msk [vmem:[%s442 + $0x50] sm:$0xf] %vm1622, %v1610
            %1644 = vst.msk [vmem:[%s442 + $0x54] sm:$0xf] %vm1622, %v1611
            %1645 = vst.msk [vmem:[%s442 + $0x58] sm:$0xf] %vm1622, %v1612
            %1646 = vst.msk [vmem:[%s442 + $0x5c] sm:$0xf] %vm1622, %v1613
            %1647 = vst.msk [vmem:[%s442 + $0x60] sm:$0xf] %vm1622, %v1614
            %1648 = vst.msk [vmem:[%s442 + $0x64] sm:$0xf] %vm1622, %v1615
            %1649 = vst.msk [vmem:[%s442 + $0x68] sm:$0xf] %vm1622, %v1616
            %1650 = vst.msk [vmem:[%s442 + $0x6c] sm:$0xf] %vm1622, %v1617
            %1651 = vst.msk [vmem:[%s442 + $0x70] sm:$0xf] %vm1622, %v1618
            %1652 = vst.msk [vmem:[%s442 + $0x74] sm:$0xf] %vm1622, %v1619
            %1653 = vst.msk [vmem:[%s442 + $0x78] sm:$0xf] %vm1622, %v1620
            %1654 = vst.msk [vmem:[%s442 + $0x7c] sm:$0xf] %vm1622, %v1621
            %1687 = vrot.lane.b32.xlu0 %v1138, 64
            %v1688 = vpop.permute.xlu0 %1687
            %1689 = vrot.lane.b32.xlu0 %v1139, 64
            %v1690 = vpop.permute.xlu0 %1689
            %1691 = vrot.lane.b32.xlu0 %v1140, 64
            %v1692 = vpop.permute.xlu0 %1691
            %1693 = vrot.lane.b32.xlu0 %v1141, 64
            %v1694 = vpop.permute.xlu0 %1693
            %1695 = vrot.lane.b32.xlu0 %v1142, 64
            %v1696 = vpop.permute.xlu0 %1695
            %1697 = vrot.lane.b32.xlu0 %v1143, 64
            %v1698 = vpop.permute.xlu0 %1697
            %1699 = vrot.lane.b32.xlu0 %v1144, 64
            %v1700 = vpop.permute.xlu0 %1699
            %1701 = vrot.lane.b32.xlu0 %v1145, 64
            %v1702 = vpop.permute.xlu0 %1701
            %1703 = vrot.lane.b32.xlu0 %v1146, 64
            %v1704 = vpop.permute.xlu0 %1703
            %1705 = vrot.lane.b32.xlu0 %v1147, 64
            %v1706 = vpop.permute.xlu0 %1705
            %1707 = vrot.lane.b32.xlu0 %v1148, 64
            %v1708 = vpop.permute.xlu0 %1707
            %1709 = vrot.lane.b32.xlu0 %v1149, 64
            %v1710 = vpop.permute.xlu0 %1709
            %1711 = vrot.lane.b32.xlu0 %v1150, 64
            %v1712 = vpop.permute.xlu0 %1711
            %1713 = vrot.lane.b32.xlu0 %v1151, 64
            %v1714 = vpop.permute.xlu0 %1713
            %1715 = vrot.lane.b32.xlu0 %v1152, 64
            %v1716 = vpop.permute.xlu0 %1715
            %1717 = vrot.lane.b32.xlu0 %v1153, 64
            %v1718 = vpop.permute.xlu0 %1717
            %1719 = vrot.lane.b32.xlu0 %v1154, 64
            %v1720 = vpop.permute.xlu0 %1719
            %1721 = vrot.lane.b32.xlu0 %v1155, 64
            %v1722 = vpop.permute.xlu0 %1721
            %1723 = vrot.lane.b32.xlu0 %v1156, 64
            %v1724 = vpop.permute.xlu0 %1723
            %1725 = vrot.lane.b32.xlu0 %v1157, 64
            %v1726 = vpop.permute.xlu0 %1725
            %1727 = vrot.lane.b32.xlu0 %v1158, 64
            %v1728 = vpop.permute.xlu0 %1727
            %1729 = vrot.lane.b32.xlu0 %v1159, 64
            %v1730 = vpop.permute.xlu0 %1729
            %1731 = vrot.lane.b32.xlu0 %v1160, 64
            %v1732 = vpop.permute.xlu0 %1731
            %1733 = vrot.lane.b32.xlu0 %v1161, 64
            %v1734 = vpop.permute.xlu0 %1733
            %1735 = vrot.lane.b32.xlu0 %v1162, 64
            %v1736 = vpop.permute.xlu0 %1735
            %1737 = vrot.lane.b32.xlu0 %v1163, 64
            %v1738 = vpop.permute.xlu0 %1737
            %1739 = vrot.lane.b32.xlu0 %v1164, 64
            %v1740 = vpop.permute.xlu0 %1739
            %1741 = vrot.lane.b32.xlu0 %v1165, 64
            %v1742 = vpop.permute.xlu0 %1741
            %1743 = vrot.lane.b32.xlu0 %v1166, 64
            %v1744 = vpop.permute.xlu0 %1743
            %1745 = vrot.lane.b32.xlu0 %v1167, 64
            %v1746 = vpop.permute.xlu0 %1745
            %1747 = vrot.lane.b32.xlu0 %v1168, 64
            %v1748 = vpop.permute.xlu0 %1747
            %1749 = vrot.lane.b32.xlu0 %v1169, 64
            %v1750 = vpop.permute.xlu0 %1749
            %v1783 = vmul.f32 %v1106, %v1688
            %v1784 = vmul.f32 %v1107, %v1690
            %v1785 = vmul.f32 %v1108, %v1692
            %v1786 = vmul.f32 %v1109, %v1694
            %v1787 = vmul.f32 %v1110, %v1696
            %v1788 = vmul.f32 %v1111, %v1698
            %v1789 = vmul.f32 %v1112, %v1700
            %v1790 = vmul.f32 %v1113, %v1702
            %v1791 = vmul.f32 %v1114, %v1704
            %v1792 = vmul.f32 %v1115, %v1706
            %v1793 = vmul.f32 %v1116, %v1708
            %v1794 = vmul.f32 %v1117, %v1710
            %v1795 = vmul.f32 %v1118, %v1712
            %v1796 = vmul.f32 %v1119, %v1714
            %v1797 = vmul.f32 %v1120, %v1716
            %v1798 = vmul.f32 %v1121, %v1718
            %v1799 = vmul.f32 %v1122, %v1720
            %v1800 = vmul.f32 %v1123, %v1722
            %v1801 = vmul.f32 %v1124, %v1724
            %v1802 = vmul.f32 %v1125, %v1726
            %v1803 = vmul.f32 %v1126, %v1728
            %v1804 = vmul.f32 %v1127, %v1730
            %v1805 = vmul.f32 %v1128, %v1732
            %v1806 = vmul.f32 %v1129, %v1734
            %v1807 = vmul.f32 %v1130, %v1736
            %v1808 = vmul.f32 %v1131, %v1738
            %v1809 = vmul.f32 %v1132, %v1740
            %v1810 = vmul.f32 %v1133, %v1742
            %v1811 = vmul.f32 %v1134, %v1744
            %v1812 = vmul.f32 %v1135, %v1746
            %v1813 = vmul.f32 %v1136, %v1748
            %v1814 = vmul.f32 %v1137, %v1750
            %v1815 = vmul.f32 %v1106, %v1170
            %v1816 = vmul.f32 %v1107, %v1171
            %v1817 = vmul.f32 %v1108, %v1172
            %v1818 = vmul.f32 %v1109, %v1173
            %v1819 = vmul.f32 %v1110, %v1174
            %v1820 = vmul.f32 %v1111, %v1175
            %v1821 = vmul.f32 %v1112, %v1176
            %v1822 = vmul.f32 %v1113, %v1177
            %v1823 = vmul.f32 %v1114, %v1178
            %v1824 = vmul.f32 %v1115, %v1179
            %v1825 = vmul.f32 %v1116, %v1180
            %v1826 = vmul.f32 %v1117, %v1181
            %v1827 = vmul.f32 %v1118, %v1182
            %v1828 = vmul.f32 %v1119, %v1183
            %v1829 = vmul.f32 %v1120, %v1184
            %v1830 = vmul.f32 %v1121, %v1185
            %v1831 = vmul.f32 %v1122, %v1186
            %v1832 = vmul.f32 %v1123, %v1187
            %v1833 = vmul.f32 %v1124, %v1188
            %v1834 = vmul.f32 %v1125, %v1189
            %v1835 = vmul.f32 %v1126, %v1190
            %v1836 = vmul.f32 %v1127, %v1191
            %v1837 = vmul.f32 %v1128, %v1192
            %v1838 = vmul.f32 %v1129, %v1193
            %v1839 = vmul.f32 %v1130, %v1194
            %v1840 = vmul.f32 %v1131, %v1195
            %v1841 = vmul.f32 %v1132, %v1196
            %v1842 = vmul.f32 %v1133, %v1197
            %v1843 = vmul.f32 %v1134, %v1198
            %v1844 = vmul.f32 %v1135, %v1199
            %v1845 = vmul.f32 %v1136, %v1200
            %v1846 = vmul.f32 %v1137, %v1201
            %1879 = vrot.lane.b32.xlu0 %v1815, 64
            %v1880 = vpop.permute.xlu0 %1879
            %1881 = vrot.lane.b32.xlu0 %v1816, 64
            %v1882 = vpop.permute.xlu0 %1881
            %1883 = vrot.lane.b32.xlu0 %v1817, 64
            %v1884 = vpop.permute.xlu0 %1883
            %1885 = vrot.lane.b32.xlu0 %v1818, 64
            %v1886 = vpop.permute.xlu0 %1885
            %1887 = vrot.lane.b32.xlu0 %v1819, 64
            %v1888 = vpop.permute.xlu0 %1887
            %1889 = vrot.lane.b32.xlu0 %v1820, 64
            %v1890 = vpop.permute.xlu0 %1889
            %1891 = vrot.lane.b32.xlu0 %v1821, 64
            %v1892 = vpop.permute.xlu0 %1891
            %1893 = vrot.lane.b32.xlu0 %v1822, 64
            %v1894 = vpop.permute.xlu0 %1893
            %1895 = vrot.lane.b32.xlu0 %v1823, 64
            %v1896 = vpop.permute.xlu0 %1895
            %1897 = vrot.lane.b32.xlu0 %v1824, 64
            %v1898 = vpop.permute.xlu0 %1897
            %1899 = vrot.lane.b32.xlu0 %v1825, 64
            %v1900 = vpop.permute.xlu0 %1899
            %1901 = vrot.lane.b32.xlu0 %v1826, 64
            %v1902 = vpop.permute.xlu0 %1901
            %1903 = vrot.lane.b32.xlu0 %v1827, 64
            %v1904 = vpop.permute.xlu0 %1903
            %1905 = vrot.lane.b32.xlu0 %v1828, 64
            %v1906 = vpop.permute.xlu0 %1905
            %1907 = vrot.lane.b32.xlu0 %v1829, 64
            %v1908 = vpop.permute.xlu0 %1907
            %1909 = vrot.lane.b32.xlu0 %v1830, 64
            %v1910 = vpop.permute.xlu0 %1909
            %1911 = vrot.lane.b32.xlu0 %v1831, 64
            %v1912 = vpop.permute.xlu0 %1911
            %1913 = vrot.lane.b32.xlu0 %v1832, 64
            %v1914 = vpop.permute.xlu0 %1913
            %1915 = vrot.lane.b32.xlu0 %v1833, 64
            %v1916 = vpop.permute.xlu0 %1915
            %1917 = vrot.lane.b32.xlu0 %v1834, 64
            %v1918 = vpop.permute.xlu0 %1917
            %1919 = vrot.lane.b32.xlu0 %v1835, 64
            %v1920 = vpop.permute.xlu0 %1919
            %1921 = vrot.lane.b32.xlu0 %v1836, 64
            %v1922 = vpop.permute.xlu0 %1921
            %1923 = vrot.lane.b32.xlu0 %v1837, 64
            %v1924 = vpop.permute.xlu0 %1923
            %1925 = vrot.lane.b32.xlu0 %v1838, 64
            %v1926 = vpop.permute.xlu0 %1925
            %1927 = vrot.lane.b32.xlu0 %v1839, 64
            %v1928 = vpop.permute.xlu0 %1927
            %1929 = vrot.lane.b32.xlu0 %v1840, 64
            %v1930 = vpop.permute.xlu0 %1929
            %1931 = vrot.lane.b32.xlu0 %v1841, 64
            %v1932 = vpop.permute.xlu0 %1931
            %1933 = vrot.lane.b32.xlu0 %v1842, 64
            %v1934 = vpop.permute.xlu0 %1933
            %1935 = vrot.lane.b32.xlu0 %v1843, 64
            %v1936 = vpop.permute.xlu0 %1935
            %1937 = vrot.lane.b32.xlu0 %v1844, 64
            %v1938 = vpop.permute.xlu0 %1937
            %1939 = vrot.lane.b32.xlu0 %v1845, 64
            %v1940 = vpop.permute.xlu0 %1939
            %1941 = vrot.lane.b32.xlu0 %v1846, 64
            %v1942 = vpop.permute.xlu0 %1941
            %v1975 = vadd.f32 %v1783, %v1880
            %v1976 = vadd.f32 %v1784, %v1882
            %v1977 = vadd.f32 %v1785, %v1884
            %v1978 = vadd.f32 %v1786, %v1886
            %v1979 = vadd.f32 %v1787, %v1888
            %v1980 = vadd.f32 %v1788, %v1890
            %v1981 = vadd.f32 %v1789, %v1892
            %v1982 = vadd.f32 %v1790, %v1894
            %v1983 = vadd.f32 %v1791, %v1896
            %v1984 = vadd.f32 %v1792, %v1898
            %v1985 = vadd.f32 %v1793, %v1900
            %v1986 = vadd.f32 %v1794, %v1902
            %v1987 = vadd.f32 %v1795, %v1904
            %v1988 = vadd.f32 %v1796, %v1906
            %v1989 = vadd.f32 %v1797, %v1908
            %v1990 = vadd.f32 %v1798, %v1910
            %v1991 = vadd.f32 %v1799, %v1912
            %v1992 = vadd.f32 %v1800, %v1914
            %v1993 = vadd.f32 %v1801, %v1916
            %v1994 = vadd.f32 %v1802, %v1918
            %v1995 = vadd.f32 %v1803, %v1920
            %v1996 = vadd.f32 %v1804, %v1922
            %v1997 = vadd.f32 %v1805, %v1924
            %v1998 = vadd.f32 %v1806, %v1926
            %v1999 = vadd.f32 %v1807, %v1928
            %v2000 = vadd.f32 %v1808, %v1930
            %v2001 = vadd.f32 %v1809, %v1932
            %v2002 = vadd.f32 %v1810, %v1934
            %v2003 = vadd.f32 %v1811, %v1936
            %v2004 = vadd.f32 %v1812, %v1938
            %v2005 = vadd.f32 %v1813, %v1940
            %v2006 = vadd.f32 %v1814, %v1942
            %v2007 = vmul.f32 %v1975, 0.088388346
            %v2008 = vmul.f32 %v1976, 0.088388346
            %v2009 = vmul.f32 %v1977, 0.088388346
            %v2010 = vmul.f32 %v1978, 0.088388346
            %v2011 = vmul.f32 %v1979, 0.088388346
            %v2012 = vmul.f32 %v1980, 0.088388346
            %v2013 = vmul.f32 %v1981, 0.088388346
            %v2014 = vmul.f32 %v1982, 0.088388346
            %v2015 = vmul.f32 %v1983, 0.088388346
            %v2016 = vmul.f32 %v1984, 0.088388346
            %v2017 = vmul.f32 %v1985, 0.088388346
            %v2018 = vmul.f32 %v1986, 0.088388346
            %v2019 = vmul.f32 %v1987, 0.088388346
            %v2020 = vmul.f32 %v1988, 0.088388346
            %v2021 = vmul.f32 %v1989, 0.088388346
            %v2022 = vmul.f32 %v1990, 0.088388346
            %v2023 = vmul.f32 %v1991, 0.088388346
            %v2024 = vmul.f32 %v1992, 0.088388346
            %v2025 = vmul.f32 %v1993, 0.088388346
            %v2026 = vmul.f32 %v1994, 0.088388346
            %v2027 = vmul.f32 %v1995, 0.088388346
            %v2028 = vmul.f32 %v1996, 0.088388346
            %v2029 = vmul.f32 %v1997, 0.088388346
            %v2030 = vmul.f32 %v1998, 0.088388346
            %v2031 = vmul.f32 %v1999, 0.088388346
            %v2032 = vmul.f32 %v2000, 0.088388346
            %v2033 = vmul.f32 %v2001, 0.088388346
            %v2034 = vmul.f32 %v2002, 0.088388346
            %v2035 = vmul.f32 %v2003, 0.088388346
            %v2036 = vmul.f32 %v2004, 0.088388346
            %v2037 = vmul.f32 %v2005, 0.088388346
            %v2038 = vmul.f32 %v2006, 0.088388346
            %v2039 = vpack.c.bf16 %v2007, %v2007
            %v2040 = vpack.c.bf16 %v2008, %v2008
            %v2041 = vpack.c.bf16 %v2009, %v2009
            %v2042 = vpack.c.bf16 %v2010, %v2010
            %v2043 = vpack.c.bf16 %v2011, %v2011
            %v2044 = vpack.c.bf16 %v2012, %v2012
            %v2045 = vpack.c.bf16 %v2013, %v2013
            %v2046 = vpack.c.bf16 %v2014, %v2014
            %v2047 = vpack.c.bf16 %v2015, %v2015
            %v2048 = vpack.c.bf16 %v2016, %v2016
            %v2049 = vpack.c.bf16 %v2017, %v2017
            %v2050 = vpack.c.bf16 %v2018, %v2018
            %v2051 = vpack.c.bf16 %v2019, %v2019
            %v2052 = vpack.c.bf16 %v2020, %v2020
            %v2053 = vpack.c.bf16 %v2021, %v2021
            %v2054 = vpack.c.bf16 %v2022, %v2022
            %v2055 = vpack.c.bf16 %v2023, %v2023
            %v2056 = vpack.c.bf16 %v2024, %v2024
            %v2057 = vpack.c.bf16 %v2025, %v2025
            %v2058 = vpack.c.bf16 %v2026, %v2026
            %v2059 = vpack.c.bf16 %v2027, %v2027
            %v2060 = vpack.c.bf16 %v2028, %v2028
            %v2061 = vpack.c.bf16 %v2029, %v2029
            %v2062 = vpack.c.bf16 %v2030, %v2030
            %v2063 = vpack.c.bf16 %v2031, %v2031
            %v2064 = vpack.c.bf16 %v2032, %v2032
            %v2065 = vpack.c.bf16 %v2033, %v2033
            %v2066 = vpack.c.bf16 %v2034, %v2034
            %v2067 = vpack.c.bf16 %v2035, %v2035
            %v2068 = vpack.c.bf16 %v2036, %v2036
            %v2069 = vpack.c.bf16 %v2037, %v2037
            %v2070 = vpack.c.bf16 %v2038, %v2038
            %vm2071 = vcmask 1043968
            %2072 = vst.msk [vmem:[%s442] sm:$0xf] %vm2071, %v2039
            %2073 = vst.msk [vmem:[%s442 + $0x4] sm:$0xf] %vm2071, %v2040
            %2074 = vst.msk [vmem:[%s442 + $0x8] sm:$0xf] %vm2071, %v2041
            %2075 = vst.msk [vmem:[%s442 + $0xc] sm:$0xf] %vm2071, %v2042
            %2076 = vst.msk [vmem:[%s442 + $0x10] sm:$0xf] %vm2071, %v2043
            %2077 = vst.msk [vmem:[%s442 + $0x14] sm:$0xf] %vm2071, %v2044
            %2078 = vst.msk [vmem:[%s442 + $0x18] sm:$0xf] %vm2071, %v2045
            %2079 = vst.msk [vmem:[%s442 + $0x1c] sm:$0xf] %vm2071, %v2046
            %2080 = vst.msk [vmem:[%s442 + $0x20] sm:$0xf] %vm2071, %v2047
            %2081 = vst.msk [vmem:[%s442 + $0x24] sm:$0xf] %vm2071, %v2048
            %2082 = vst.msk [vmem:[%s442 + $0x28] sm:$0xf] %vm2071, %v2049
            %2083 = vst.msk [vmem:[%s442 + $0x2c] sm:$0xf] %vm2071, %v2050
            %2084 = vst.msk [vmem:[%s442 + $0x30] sm:$0xf] %vm2071, %v2051
            %2085 = vst.msk [vmem:[%s442 + $0x34] sm:$0xf] %vm2071, %v2052
            %2086 = vst.msk [vmem:[%s442 + $0x38] sm:$0xf] %vm2071, %v2053
            %2087 = vst.msk [vmem:[%s442 + $0x3c] sm:$0xf] %vm2071, %v2054
            %2088 = vst.msk [vmem:[%s442 + $0x40] sm:$0xf] %vm2071, %v2055
            %2089 = vst.msk [vmem:[%s442 + $0x44] sm:$0xf] %vm2071, %v2056
            %2090 = vst.msk [vmem:[%s442 + $0x48] sm:$0xf] %vm2071, %v2057
            %2091 = vst.msk [vmem:[%s442 + $0x4c] sm:$0xf] %vm2071, %v2058
            %2092 = vst.msk [vmem:[%s442 + $0x50] sm:$0xf] %vm2071, %v2059
            %2093 = vst.msk [vmem:[%s442 + $0x54] sm:$0xf] %vm2071, %v2060
            %2094 = vst.msk [vmem:[%s442 + $0x58] sm:$0xf] %vm2071, %v2061
            %2095 = vst.msk [vmem:[%s442 + $0x5c] sm:$0xf] %vm2071, %v2062
            %2096 = vst.msk [vmem:[%s442 + $0x60] sm:$0xf] %vm2071, %v2063
            %2097 = vst.msk [vmem:[%s442 + $0x64] sm:$0xf] %vm2071, %v2064
            %2098 = vst.msk [vmem:[%s442 + $0x68] sm:$0xf] %vm2071, %v2065
            %2099 = vst.msk [vmem:[%s442 + $0x6c] sm:$0xf] %vm2071, %v2066
            %2100 = vst.msk [vmem:[%s442 + $0x70] sm:$0xf] %vm2071, %v2067
            %2101 = vst.msk [vmem:[%s442 + $0x74] sm:$0xf] %vm2071, %v2068
            %2102 = vst.msk [vmem:[%s442 + $0x78] sm:$0xf] %vm2071, %v2069
            %2103 = vst.msk [vmem:[%s442 + $0x7c] sm:$0xf] %vm2071, %v2070
          $region64: #{tpu_custom_call.1} parent=59 // pred_fallthru
            _
          %p2104 = scmp.ge.s32.totalorder %s33, 2
          %p2105 = scmp.lt.s32.totalorder %s33, 4
          %p2106 = pnand %p2104, %p2105
          %p2107 = pneg %p2106
          // Predicated region
          $region65: #{tpu_custom_call.1} parent=59 // pred_check
            _
          $region66: #{tpu_custom_call.1} parent=59 // pred_check_branch
            %2109 = sbr.rel (%p2106) target = $region68
          $region67: #{tpu_custom_call.1} parent=59 // pred_region
            %v2110 = vmul.f32 %v1106, %v1138
            %v2111 = vmul.f32 %v1107, %v1139
            %v2112 = vmul.f32 %v1108, %v1140
            %v2113 = vmul.f32 %v1109, %v1141
            %v2114 = vmul.f32 %v1110, %v1142
            %v2115 = vmul.f32 %v1111, %v1143
            %v2116 = vmul.f32 %v1112, %v1144
            %v2117 = vmul.f32 %v1113, %v1145
            %v2118 = vmul.f32 %v1114, %v1146
            %v2119 = vmul.f32 %v1115, %v1147
            %v2120 = vmul.f32 %v1116, %v1148
            %v2121 = vmul.f32 %v1117, %v1149
            %v2122 = vmul.f32 %v1118, %v1150
            %v2123 = vmul.f32 %v1119, %v1151
            %v2124 = vmul.f32 %v1120, %v1152
            %v2125 = vmul.f32 %v1121, %v1153
            %v2126 = vmul.f32 %v1122, %v1154
            %v2127 = vmul.f32 %v1123, %v1155
            %v2128 = vmul.f32 %v1124, %v1156
            %v2129 = vmul.f32 %v1125, %v1157
            %v2130 = vmul.f32 %v1126, %v1158
            %v2131 = vmul.f32 %v1127, %v1159
            %v2132 = vmul.f32 %v1128, %v1160
            %v2133 = vmul.f32 %v1129, %v1161
            %v2134 = vmul.f32 %v1130, %v1162
            %v2135 = vmul.f32 %v1131, %v1163
            %v2136 = vmul.f32 %v1132, %v1164
            %v2137 = vmul.f32 %v1133, %v1165
            %v2138 = vmul.f32 %v1134, %v1166
            %v2139 = vmul.f32 %v1135, %v1167
            %v2140 = vmul.f32 %v1136, %v1168
            %v2141 = vmul.f32 %v1137, %v1169
            %2174 = vrot.lane.b32.xlu0 %v1170, 64
            %v2175 = vpop.permute.xlu0 %2174
            %2176 = vrot.lane.b32.xlu0 %v1171, 64
            %v2177 = vpop.permute.xlu0 %2176
            %2178 = vrot.lane.b32.xlu0 %v1172, 64
            %v2179 = vpop.permute.xlu0 %2178
            %2180 = vrot.lane.b32.xlu0 %v1173, 64
            %v2181 = vpop.permute.xlu0 %2180
            %2182 = vrot.lane.b32.xlu0 %v1174, 64
            %v2183 = vpop.permute.xlu0 %2182
            %2184 = vrot.lane.b32.xlu0 %v1175, 64
            %v2185 = vpop.permute.xlu0 %2184
            %2186 = vrot.lane.b32.xlu0 %v1176, 64
            %v2187 = vpop.permute.xlu0 %2186
            %2188 = vrot.lane.b32.xlu0 %v1177, 64
            %v2189 = vpop.permute.xlu0 %2188
            %2190 = vrot.lane.b32.xlu0 %v1178, 64
            %v2191 = vpop.permute.xlu0 %2190
            %2192 = vrot.lane.b32.xlu0 %v1179, 64
            %v2193 = vpop.permute.xlu0 %2192
            %2194 = vrot.lane.b32.xlu0 %v1180, 64
            %v2195 = vpop.permute.xlu0 %2194
            %2196 = vrot.lane.b32.xlu0 %v1181, 64
            %v2197 = vpop.permute.xlu0 %2196
            %2198 = vrot.lane.b32.xlu0 %v1182, 64
            %v2199 = vpop.permute.xlu0 %2198
            %2200 = vrot.lane.b32.xlu0 %v1183, 64
            %v2201 = vpop.permute.xlu0 %2200
            %2202 = vrot.lane.b32.xlu0 %v1184, 64
            %v2203 = vpop.permute.xlu0 %2202
            %2204 = vrot.lane.b32.xlu0 %v1185, 64
            %v2205 = vpop.permute.xlu0 %2204
            %2206 = vrot.lane.b32.xlu0 %v1186, 64
            %v2207 = vpop.permute.xlu0 %2206
            %2208 = vrot.lane.b32.xlu0 %v1187, 64
            %v2209 = vpop.permute.xlu0 %2208
            %2210 = vrot.lane.b32.xlu0 %v1188, 64
            %v2211 = vpop.permute.xlu0 %2210
            %2212 = vrot.lane.b32.xlu0 %v1189, 64
            %v2213 = vpop.permute.xlu0 %2212
            %2214 = vrot.lane.b32.xlu0 %v1190, 64
            %v2215 = vpop.permute.xlu0 %2214
            %2216 = vrot.lane.b32.xlu0 %v1191, 64
            %v2217 = vpop.permute.xlu0 %2216
            %2218 = vrot.lane.b32.xlu0 %v1192, 64
            %v2219 = vpop.permute.xlu0 %2218
            %2220 = vrot.lane.b32.xlu0 %v1193, 64
            %v2221 = vpop.permute.xlu0 %2220
            %2222 = vrot.lane.b32.xlu0 %v1194, 64
            %v2223 = vpop.permute.xlu0 %2222
            %2224 = vrot.lane.b32.xlu0 %v1195, 64
            %v2225 = vpop.permute.xlu0 %2224
            %2226 = vrot.lane.b32.xlu0 %v1196, 64
            %v2227 = vpop.permute.xlu0 %2226
            %2228 = vrot.lane.b32.xlu0 %v1197, 64
            %v2229 = vpop.permute.xlu0 %2228
            %2230 = vrot.lane.b32.xlu0 %v1198, 64
            %v2231 = vpop.permute.xlu0 %2230
            %2232 = vrot.lane.b32.xlu0 %v1199, 64
            %v2233 = vpop.permute.xlu0 %2232
            %2234 = vrot.lane.b32.xlu0 %v1200, 64
            %v2235 = vpop.permute.xlu0 %2234
            %2236 = vrot.lane.b32.xlu0 %v1201, 64
            %v2237 = vpop.permute.xlu0 %2236
            %v2270 = vmul.f32 %v1106, %v2175
            %v2271 = vmul.f32 %v1107, %v2177
            %v2272 = vmul.f32 %v1108, %v2179
            %v2273 = vmul.f32 %v1109, %v2181
            %v2274 = vmul.f32 %v1110, %v2183
            %v2275 = vmul.f32 %v1111, %v2185
            %v2276 = vmul.f32 %v1112, %v2187
            %v2277 = vmul.f32 %v1113, %v2189
            %v2278 = vmul.f32 %v1114, %v2191
            %v2279 = vmul.f32 %v1115, %v2193
            %v2280 = vmul.f32 %v1116, %v2195
            %v2281 = vmul.f32 %v1117, %v2197
            %v2282 = vmul.f32 %v1118, %v2199
            %v2283 = vmul.f32 %v1119, %v2201
            %v2284 = vmul.f32 %v1120, %v2203
            %v2285 = vmul.f32 %v1121, %v2205
            %v2286 = vmul.f32 %v1122, %v2207
            %v2287 = vmul.f32 %v1123, %v2209
            %v2288 = vmul.f32 %v1124, %v2211
            %v2289 = vmul.f32 %v1125, %v2213
            %v2290 = vmul.f32 %v1126, %v2215
            %v2291 = vmul.f32 %v1127, %v2217
            %v2292 = vmul.f32 %v1128, %v2219
            %v2293 = vmul.f32 %v1129, %v2221
            %v2294 = vmul.f32 %v1130, %v2223
            %v2295 = vmul.f32 %v1131, %v2225
            %v2296 = vmul.f32 %v1132, %v2227
            %v2297 = vmul.f32 %v1133, %v2229
            %v2298 = vmul.f32 %v1134, %v2231
            %v2299 = vmul.f32 %v1135, %v2233
            %v2300 = vmul.f32 %v1136, %v2235
            %v2301 = vmul.f32 %v1137, %v2237
            %2334 = vrot.lane.b32.xlu0 %v2270, 64
            %v2335 = vpop.permute.xlu0 %2334
            %2336 = vrot.lane.b32.xlu0 %v2271, 64
            %v2337 = vpop.permute.xlu0 %2336
            %2338 = vrot.lane.b32.xlu0 %v2272, 64
            %v2339 = vpop.permute.xlu0 %2338
            %2340 = vrot.lane.b32.xlu0 %v2273, 64
            %v2341 = vpop.permute.xlu0 %2340
            %2342 = vrot.lane.b32.xlu0 %v2274, 64
            %v2343 = vpop.permute.xlu0 %2342
            %2344 = vrot.lane.b32.xlu0 %v2275, 64
            %v2345 = vpop.permute.xlu0 %2344
            %2346 = vrot.lane.b32.xlu0 %v2276, 64
            %v2347 = vpop.permute.xlu0 %2346
            %2348 = vrot.lane.b32.xlu0 %v2277, 64
            %v2349 = vpop.permute.xlu0 %2348
            %2350 = vrot.lane.b32.xlu0 %v2278, 64
            %v2351 = vpop.permute.xlu0 %2350
            %2352 = vrot.lane.b32.xlu0 %v2279, 64
            %v2353 = vpop.permute.xlu0 %2352
            %2354 = vrot.lane.b32.xlu0 %v2280, 64
            %v2355 = vpop.permute.xlu0 %2354
            %2356 = vrot.lane.b32.xlu0 %v2281, 64
            %v2357 = vpop.permute.xlu0 %2356
            %2358 = vrot.lane.b32.xlu0 %v2282, 64
            %v2359 = vpop.permute.xlu0 %2358
            %2360 = vrot.lane.b32.xlu0 %v2283, 64
            %v2361 = vpop.permute.xlu0 %2360
            %2362 = vrot.lane.b32.xlu0 %v2284, 64
            %v2363 = vpop.permute.xlu0 %2362
            %2364 = vrot.lane.b32.xlu0 %v2285, 64
            %v2365 = vpop.permute.xlu0 %2364
            %2366 = vrot.lane.b32.xlu0 %v2286, 64
            %v2367 = vpop.permute.xlu0 %2366
            %2368 = vrot.lane.b32.xlu0 %v2287, 64
            %v2369 = vpop.permute.xlu0 %2368
            %2370 = vrot.lane.b32.xlu0 %v2288, 64
            %v2371 = vpop.permute.xlu0 %2370
            %2372 = vrot.lane.b32.xlu0 %v2289, 64
            %v2373 = vpop.permute.xlu0 %2372
            %2374 = vrot.lane.b32.xlu0 %v2290, 64
            %v2375 = vpop.permute.xlu0 %2374
            %2376 = vrot.lane.b32.xlu0 %v2291, 64
            %v2377 = vpop.permute.xlu0 %2376
            %2378 = vrot.lane.b32.xlu0 %v2292, 64
            %v2379 = vpop.permute.xlu0 %2378
            %2380 = vrot.lane.b32.xlu0 %v2293, 64
            %v2381 = vpop.permute.xlu0 %2380
            %2382 = vrot.lane.b32.xlu0 %v2294, 64
            %v2383 = vpop.permute.xlu0 %2382
            %2384 = vrot.lane.b32.xlu0 %v2295, 64
            %v2385 = vpop.permute.xlu0 %2384
            %2386 = vrot.lane.b32.xlu0 %v2296, 64
            %v2387 = vpop.permute.xlu0 %2386
            %2388 = vrot.lane.b32.xlu0 %v2297, 64
            %v2389 = vpop.permute.xlu0 %2388
            %2390 = vrot.lane.b32.xlu0 %v2298, 64
            %v2391 = vpop.permute.xlu0 %2390
            %2392 = vrot.lane.b32.xlu0 %v2299, 64
            %v2393 = vpop.permute.xlu0 %2392
            %2394 = vrot.lane.b32.xlu0 %v2300, 64
            %v2395 = vpop.permute.xlu0 %2394
            %2396 = vrot.lane.b32.xlu0 %v2301, 64
            %v2397 = vpop.permute.xlu0 %2396
            %v2430 = vsub.f32 %v2110, %v2335
            %v2431 = vsub.f32 %v2111, %v2337
            %v2432 = vsub.f32 %v2112, %v2339
            %v2433 = vsub.f32 %v2113, %v2341
            %v2434 = vsub.f32 %v2114, %v2343
            %v2435 = vsub.f32 %v2115, %v2345
            %v2436 = vsub.f32 %v2116, %v2347
            %v2437 = vsub.f32 %v2117, %v2349
            %v2438 = vsub.f32 %v2118, %v2351
            %v2439 = vsub.f32 %v2119, %v2353
            %v2440 = vsub.f32 %v2120, %v2355
            %v2441 = vsub.f32 %v2121, %v2357
            %v2442 = vsub.f32 %v2122, %v2359
            %v2443 = vsub.f32 %v2123, %v2361
            %v2444 = vsub.f32 %v2124, %v2363
            %v2445 = vsub.f32 %v2125, %v2365
            %v2446 = vsub.f32 %v2126, %v2367
            %v2447 = vsub.f32 %v2127, %v2369
            %v2448 = vsub.f32 %v2128, %v2371
            %v2449 = vsub.f32 %v2129, %v2373
            %v2450 = vsub.f32 %v2130, %v2375
            %v2451 = vsub.f32 %v2131, %v2377
            %v2452 = vsub.f32 %v2132, %v2379
            %v2453 = vsub.f32 %v2133, %v2381
            %v2454 = vsub.f32 %v2134, %v2383
            %v2455 = vsub.f32 %v2135, %v2385
            %v2456 = vsub.f32 %v2136, %v2387
            %v2457 = vsub.f32 %v2137, %v2389
            %v2458 = vsub.f32 %v2138, %v2391
            %v2459 = vsub.f32 %v2139, %v2393
            %v2460 = vsub.f32 %v2140, %v2395
            %v2461 = vsub.f32 %v2141, %v2397
            %v2462 = vpack.c.bf16 %v2430, %v2430
            %v2463 = vpack.c.bf16 %v2431, %v2431
            %v2464 = vpack.c.bf16 %v2432, %v2432
            %v2465 = vpack.c.bf16 %v2433, %v2433
            %v2466 = vpack.c.bf16 %v2434, %v2434
            %v2467 = vpack.c.bf16 %v2435, %v2435
            %v2468 = vpack.c.bf16 %v2436, %v2436
            %v2469 = vpack.c.bf16 %v2437, %v2437
            %v2470 = vpack.c.bf16 %v2438, %v2438
            %v2471 = vpack.c.bf16 %v2439, %v2439
            %v2472 = vpack.c.bf16 %v2440, %v2440
            %v2473 = vpack.c.bf16 %v2441, %v2441
            %v2474 = vpack.c.bf16 %v2442, %v2442
            %v2475 = vpack.c.bf16 %v2443, %v2443
            %v2476 = vpack.c.bf16 %v2444, %v2444
            %v2477 = vpack.c.bf16 %v2445, %v2445
            %v2478 = vpack.c.bf16 %v2446, %v2446
            %v2479 = vpack.c.bf16 %v2447, %v2447
            %v2480 = vpack.c.bf16 %v2448, %v2448
            %v2481 = vpack.c.bf16 %v2449, %v2449
            %v2482 = vpack.c.bf16 %v2450, %v2450
            %v2483 = vpack.c.bf16 %v2451, %v2451
            %v2484 = vpack.c.bf16 %v2452, %v2452
            %v2485 = vpack.c.bf16 %v2453, %v2453
            %v2486 = vpack.c.bf16 %v2454, %v2454
            %v2487 = vpack.c.bf16 %v2455, %v2455
            %v2488 = vpack.c.bf16 %v2456, %v2456
            %v2489 = vpack.c.bf16 %v2457, %v2457
            %v2490 = vpack.c.bf16 %v2458, %v2458
            %v2491 = vpack.c.bf16 %v2459, %v2459
            %v2492 = vpack.c.bf16 %v2460, %v2460
            %v2493 = vpack.c.bf16 %v2461, %v2461
            %vm2494 = vcmask 519168
            %2495 = vst.msk [vmem:[%s442] sm:$0xf] %vm2494, %v2462
            %2496 = vst.msk [vmem:[%s442 + $0x4] sm:$0xf] %vm2494, %v2463
            %2497 = vst.msk [vmem:[%s442 + $0x8] sm:$0xf] %vm2494, %v2464
            %2498 = vst.msk [vmem:[%s442 + $0xc] sm:$0xf] %vm2494, %v2465
            %2499 = vst.msk [vmem:[%s442 + $0x10] sm:$0xf] %vm2494, %v2466
            %2500 = vst.msk [vmem:[%s442 + $0x14] sm:$0xf] %vm2494, %v2467
            %2501 = vst.msk [vmem:[%s442 + $0x18] sm:$0xf] %vm2494, %v2468
            %2502 = vst.msk [vmem:[%s442 + $0x1c] sm:$0xf] %vm2494, %v2469
            %2503 = vst.msk [vmem:[%s442 + $0x20] sm:$0xf] %vm2494, %v2470
            %2504 = vst.msk [vmem:[%s442 + $0x24] sm:$0xf] %vm2494, %v2471
            %2505 = vst.msk [vmem:[%s442 + $0x28] sm:$0xf] %vm2494, %v2472
            %2506 = vst.msk [vmem:[%s442 + $0x2c] sm:$0xf] %vm2494, %v2473
            %2507 = vst.msk [vmem:[%s442 + $0x30] sm:$0xf] %vm2494, %v2474
            %2508 = vst.msk [vmem:[%s442 + $0x34] sm:$0xf] %vm2494, %v2475
            %2509 = vst.msk [vmem:[%s442 + $0x38] sm:$0xf] %vm2494, %v2476
            %2510 = vst.msk [vmem:[%s442 + $0x3c] sm:$0xf] %vm2494, %v2477
            %2511 = vst.msk [vmem:[%s442 + $0x40] sm:$0xf] %vm2494, %v2478
            %2512 = vst.msk [vmem:[%s442 + $0x44] sm:$0xf] %vm2494, %v2479
            %2513 = vst.msk [vmem:[%s442 + $0x48] sm:$0xf] %vm2494, %v2480
            %2514 = vst.msk [vmem:[%s442 + $0x4c] sm:$0xf] %vm2494, %v2481
            %2515 = vst.msk [vmem:[%s442 + $0x50] sm:$0xf] %vm2494, %v2482
            %2516 = vst.msk [vmem:[%s442 + $0x54] sm:$0xf] %vm2494, %v2483
            %2517 = vst.msk [vmem:[%s442 + $0x58] sm:$0xf] %vm2494, %v2484
            %2518 = vst.msk [vmem:[%s442 + $0x5c] sm:$0xf] %vm2494, %v2485
            %2519 = vst.msk [vmem:[%s442 + $0x60] sm:$0xf] %vm2494, %v2486
            %2520 = vst.msk [vmem:[%s442 + $0x64] sm:$0xf] %vm2494, %v2487
            %2521 = vst.msk [vmem:[%s442 + $0x68] sm:$0xf] %vm2494, %v2488
            %2522 = vst.msk [vmem:[%s442 + $0x6c] sm:$0xf] %vm2494, %v2489
            %2523 = vst.msk [vmem:[%s442 + $0x70] sm:$0xf] %vm2494, %v2490
            %2524 = vst.msk [vmem:[%s442 + $0x74] sm:$0xf] %vm2494, %v2491
            %2525 = vst.msk [vmem:[%s442 + $0x78] sm:$0xf] %vm2494, %v2492
            %2526 = vst.msk [vmem:[%s442 + $0x7c] sm:$0xf] %vm2494, %v2493
            %2559 = vrot.lane.b32.xlu0 %v1138, 64
            %v2560 = vpop.permute.xlu0 %2559
            %2561 = vrot.lane.b32.xlu0 %v1139, 64
            %v2562 = vpop.permute.xlu0 %2561
            %2563 = vrot.lane.b32.xlu0 %v1140, 64
            %v2564 = vpop.permute.xlu0 %2563
            %2565 = vrot.lane.b32.xlu0 %v1141, 64
            %v2566 = vpop.permute.xlu0 %2565
            %2567 = vrot.lane.b32.xlu0 %v1142, 64
            %v2568 = vpop.permute.xlu0 %2567
            %2569 = vrot.lane.b32.xlu0 %v1143, 64
            %v2570 = vpop.permute.xlu0 %2569
            %2571 = vrot.lane.b32.xlu0 %v1144, 64
            %v2572 = vpop.permute.xlu0 %2571
            %2573 = vrot.lane.b32.xlu0 %v1145, 64
            %v2574 = vpop.permute.xlu0 %2573
            %2575 = vrot.lane.b32.xlu0 %v1146, 64
            %v2576 = vpop.permute.xlu0 %2575
            %2577 = vrot.lane.b32.xlu0 %v1147, 64
            %v2578 = vpop.permute.xlu0 %2577
            %2579 = vrot.lane.b32.xlu0 %v1148, 64
            %v2580 = vpop.permute.xlu0 %2579
            %2581 = vrot.lane.b32.xlu0 %v1149, 64
            %v2582 = vpop.permute.xlu0 %2581
            %2583 = vrot.lane.b32.xlu0 %v1150, 64
            %v2584 = vpop.permute.xlu0 %2583
            %2585 = vrot.lane.b32.xlu0 %v1151, 64
            %v2586 = vpop.permute.xlu0 %2585
            %2587 = vrot.lane.b32.xlu0 %v1152, 64
            %v2588 = vpop.permute.xlu0 %2587
            %2589 = vrot.lane.b32.xlu0 %v1153, 64
            %v2590 = vpop.permute.xlu0 %2589
            %2591 = vrot.lane.b32.xlu0 %v1154, 64
            %v2592 = vpop.permute.xlu0 %2591
            %2593 = vrot.lane.b32.xlu0 %v1155, 64
            %v2594 = vpop.permute.xlu0 %2593
            %2595 = vrot.lane.b32.xlu0 %v1156, 64
            %v2596 = vpop.permute.xlu0 %2595
            %2597 = vrot.lane.b32.xlu0 %v1157, 64
            %v2598 = vpop.permute.xlu0 %2597
            %2599 = vrot.lane.b32.xlu0 %v1158, 64
            %v2600 = vpop.permute.xlu0 %2599
            %2601 = vrot.lane.b32.xlu0 %v1159, 64
            %v2602 = vpop.permute.xlu0 %2601
            %2603 = vrot.lane.b32.xlu0 %v1160, 64
            %v2604 = vpop.permute.xlu0 %2603
            %2605 = vrot.lane.b32.xlu0 %v1161, 64
            %v2606 = vpop.permute.xlu0 %2605
            %2607 = vrot.lane.b32.xlu0 %v1162, 64
            %v2608 = vpop.permute.xlu0 %2607
            %2609 = vrot.lane.b32.xlu0 %v1163, 64
            %v2610 = vpop.permute.xlu0 %2609
            %2611 = vrot.lane.b32.xlu0 %v1164, 64
            %v2612 = vpop.permute.xlu0 %2611
            %2613 = vrot.lane.b32.xlu0 %v1165, 64
            %v2614 = vpop.permute.xlu0 %2613
            %2615 = vrot.lane.b32.xlu0 %v1166, 64
            %v2616 = vpop.permute.xlu0 %2615
            %2617 = vrot.lane.b32.xlu0 %v1167, 64
            %v2618 = vpop.permute.xlu0 %2617
            %2619 = vrot.lane.b32.xlu0 %v1168, 64
            %v2620 = vpop.permute.xlu0 %2619
            %2621 = vrot.lane.b32.xlu0 %v1169, 64
            %v2622 = vpop.permute.xlu0 %2621
            %v2655 = vmul.f32 %v1106, %v2560
            %v2656 = vmul.f32 %v1107, %v2562
            %v2657 = vmul.f32 %v1108, %v2564
            %v2658 = vmul.f32 %v1109, %v2566
            %v2659 = vmul.f32 %v1110, %v2568
            %v2660 = vmul.f32 %v1111, %v2570
            %v2661 = vmul.f32 %v1112, %v2572
            %v2662 = vmul.f32 %v1113, %v2574
            %v2663 = vmul.f32 %v1114, %v2576
            %v2664 = vmul.f32 %v1115, %v2578
            %v2665 = vmul.f32 %v1116, %v2580
            %v2666 = vmul.f32 %v1117, %v2582
            %v2667 = vmul.f32 %v1118, %v2584
            %v2668 = vmul.f32 %v1119, %v2586
            %v2669 = vmul.f32 %v1120, %v2588
            %v2670 = vmul.f32 %v1121, %v2590
            %v2671 = vmul.f32 %v1122, %v2592
            %v2672 = vmul.f32 %v1123, %v2594
            %v2673 = vmul.f32 %v1124, %v2596
            %v2674 = vmul.f32 %v1125, %v2598
            %v2675 = vmul.f32 %v1126, %v2600
            %v2676 = vmul.f32 %v1127, %v2602
            %v2677 = vmul.f32 %v1128, %v2604
            %v2678 = vmul.f32 %v1129, %v2606
            %v2679 = vmul.f32 %v1130, %v2608
            %v2680 = vmul.f32 %v1131, %v2610
            %v2681 = vmul.f32 %v1132, %v2612
            %v2682 = vmul.f32 %v1133, %v2614
            %v2683 = vmul.f32 %v1134, %v2616
            %v2684 = vmul.f32 %v1135, %v2618
            %v2685 = vmul.f32 %v1136, %v2620
            %v2686 = vmul.f32 %v1137, %v2622
            %v2687 = vmul.f32 %v1106, %v1170
            %v2688 = vmul.f32 %v1107, %v1171
            %v2689 = vmul.f32 %v1108, %v1172
            %v2690 = vmul.f32 %v1109, %v1173
            %v2691 = vmul.f32 %v1110, %v1174
            %v2692 = vmul.f32 %v1111, %v1175
            %v2693 = vmul.f32 %v1112, %v1176
            %v2694 = vmul.f32 %v1113, %v1177
            %v2695 = vmul.f32 %v1114, %v1178
            %v2696 = vmul.f32 %v1115, %v1179
            %v2697 = vmul.f32 %v1116, %v1180
            %v2698 = vmul.f32 %v1117, %v1181
            %v2699 = vmul.f32 %v1118, %v1182
            %v2700 = vmul.f32 %v1119, %v1183
            %v2701 = vmul.f32 %v1120, %v1184
            %v2702 = vmul.f32 %v1121, %v1185
            %v2703 = vmul.f32 %v1122, %v1186
            %v2704 = vmul.f32 %v1123, %v1187
            %v2705 = vmul.f32 %v1124, %v1188
            %v2706 = vmul.f32 %v1125, %v1189
            %v2707 = vmul.f32 %v1126, %v1190
            %v2708 = vmul.f32 %v1127, %v1191
            %v2709 = vmul.f32 %v1128, %v1192
            %v2710 = vmul.f32 %v1129, %v1193
            %v2711 = vmul.f32 %v1130, %v1194
            %v2712 = vmul.f32 %v1131, %v1195
            %v2713 = vmul.f32 %v1132, %v1196
            %v2714 = vmul.f32 %v1133, %v1197
            %v2715 = vmul.f32 %v1134, %v1198
            %v2716 = vmul.f32 %v1135, %v1199
            %v2717 = vmul.f32 %v1136, %v1200
            %v2718 = vmul.f32 %v1137, %v1201
            %2751 = vrot.lane.b32.xlu0 %v2687, 64
            %v2752 = vpop.permute.xlu0 %2751
            %2753 = vrot.lane.b32.xlu0 %v2688, 64
            %v2754 = vpop.permute.xlu0 %2753
            %2755 = vrot.lane.b32.xlu0 %v2689, 64
            %v2756 = vpop.permute.xlu0 %2755
            %2757 = vrot.lane.b32.xlu0 %v2690, 64
            %v2758 = vpop.permute.xlu0 %2757
            %2759 = vrot.lane.b32.xlu0 %v2691, 64
            %v2760 = vpop.permute.xlu0 %2759
            %2761 = vrot.lane.b32.xlu0 %v2692, 64
            %v2762 = vpop.permute.xlu0 %2761
            %2763 = vrot.lane.b32.xlu0 %v2693, 64
            %v2764 = vpop.permute.xlu0 %2763
            %2765 = vrot.lane.b32.xlu0 %v2694, 64
            %v2766 = vpop.permute.xlu0 %2765
            %2767 = vrot.lane.b32.xlu0 %v2695, 64
            %v2768 = vpop.permute.xlu0 %2767
            %2769 = vrot.lane.b32.xlu0 %v2696, 64
            %v2770 = vpop.permute.xlu0 %2769
            %2771 = vrot.lane.b32.xlu0 %v2697, 64
            %v2772 = vpop.permute.xlu0 %2771
            %2773 = vrot.lane.b32.xlu0 %v2698, 64
            %v2774 = vpop.permute.xlu0 %2773
            %2775 = vrot.lane.b32.xlu0 %v2699, 64
            %v2776 = vpop.permute.xlu0 %2775
            %2777 = vrot.lane.b32.xlu0 %v2700, 64
            %v2778 = vpop.permute.xlu0 %2777
            %2779 = vrot.lane.b32.xlu0 %v2701, 64
            %v2780 = vpop.permute.xlu0 %2779
            %2781 = vrot.lane.b32.xlu0 %v2702, 64
            %v2782 = vpop.permute.xlu0 %2781
            %2783 = vrot.lane.b32.xlu0 %v2703, 64
            %v2784 = vpop.permute.xlu0 %2783
            %2785 = vrot.lane.b32.xlu0 %v2704, 64
            %v2786 = vpop.permute.xlu0 %2785
            %2787 = vrot.lane.b32.xlu0 %v2705, 64
            %v2788 = vpop.permute.xlu0 %2787
            %2789 = vrot.lane.b32.xlu0 %v2706, 64
            %v2790 = vpop.permute.xlu0 %2789
            %2791 = vrot.lane.b32.xlu0 %v2707, 64
            %v2792 = vpop.permute.xlu0 %2791
            %2793 = vrot.lane.b32.xlu0 %v2708, 64
            %v2794 = vpop.permute.xlu0 %2793
            %2795 = vrot.lane.b32.xlu0 %v2709, 64
            %v2796 = vpop.permute.xlu0 %2795
            %2797 = vrot.lane.b32.xlu0 %v2710, 64
            %v2798 = vpop.permute.xlu0 %2797
            %2799 = vrot.lane.b32.xlu0 %v2711, 64
            %v2800 = vpop.permute.xlu0 %2799
            %2801 = vrot.lane.b32.xlu0 %v2712, 64
            %v2802 = vpop.permute.xlu0 %2801
            %2803 = vrot.lane.b32.xlu0 %v2713, 64
            %v2804 = vpop.permute.xlu0 %2803
            %2805 = vrot.lane.b32.xlu0 %v2714, 64
            %v2806 = vpop.permute.xlu0 %2805
            %2807 = vrot.lane.b32.xlu0 %v2715, 64
            %v2808 = vpop.permute.xlu0 %2807
            %2809 = vrot.lane.b32.xlu0 %v2716, 64
            %v2810 = vpop.permute.xlu0 %2809
            %2811 = vrot.lane.b32.xlu0 %v2717, 64
            %v2812 = vpop.permute.xlu0 %2811
            %2813 = vrot.lane.b32.xlu0 %v2718, 64
            %v2814 = vpop.permute.xlu0 %2813
            %v2847 = vadd.f32 %v2655, %v2752
            %v2848 = vadd.f32 %v2656, %v2754
            %v2849 = vadd.f32 %v2657, %v2756
            %v2850 = vadd.f32 %v2658, %v2758
            %v2851 = vadd.f32 %v2659, %v2760
            %v2852 = vadd.f32 %v2660, %v2762
            %v2853 = vadd.f32 %v2661, %v2764
            %v2854 = vadd.f32 %v2662, %v2766
            %v2855 = vadd.f32 %v2663, %v2768
            %v2856 = vadd.f32 %v2664, %v2770
            %v2857 = vadd.f32 %v2665, %v2772
            %v2858 = vadd.f32 %v2666, %v2774
            %v2859 = vadd.f32 %v2667, %v2776
            %v2860 = vadd.f32 %v2668, %v2778
            %v2861 = vadd.f32 %v2669, %v2780
            %v2862 = vadd.f32 %v2670, %v2782
            %v2863 = vadd.f32 %v2671, %v2784
            %v2864 = vadd.f32 %v2672, %v2786
            %v2865 = vadd.f32 %v2673, %v2788
            %v2866 = vadd.f32 %v2674, %v2790
            %v2867 = vadd.f32 %v2675, %v2792
            %v2868 = vadd.f32 %v2676, %v2794
            %v2869 = vadd.f32 %v2677, %v2796
            %v2870 = vadd.f32 %v2678, %v2798
            %v2871 = vadd.f32 %v2679, %v2800
            %v2872 = vadd.f32 %v2680, %v2802
            %v2873 = vadd.f32 %v2681, %v2804
            %v2874 = vadd.f32 %v2682, %v2806
            %v2875 = vadd.f32 %v2683, %v2808
            %v2876 = vadd.f32 %v2684, %v2810
            %v2877 = vadd.f32 %v2685, %v2812
            %v2878 = vadd.f32 %v2686, %v2814
            %v2879 = vpack.c.bf16 %v2847, %v2847
            %v2880 = vpack.c.bf16 %v2848, %v2848
            %v2881 = vpack.c.bf16 %v2849, %v2849
            %v2882 = vpack.c.bf16 %v2850, %v2850
            %v2883 = vpack.c.bf16 %v2851, %v2851
            %v2884 = vpack.c.bf16 %v2852, %v2852
            %v2885 = vpack.c.bf16 %v2853, %v2853
            %v2886 = vpack.c.bf16 %v2854, %v2854
            %v2887 = vpack.c.bf16 %v2855, %v2855
            %v2888 = vpack.c.bf16 %v2856, %v2856
            %v2889 = vpack.c.bf16 %v2857, %v2857
            %v2890 = vpack.c.bf16 %v2858, %v2858
            %v2891 = vpack.c.bf16 %v2859, %v2859
            %v2892 = vpack.c.bf16 %v2860, %v2860
            %v2893 = vpack.c.bf16 %v2861, %v2861
            %v2894 = vpack.c.bf16 %v2862, %v2862
            %v2895 = vpack.c.bf16 %v2863, %v2863
            %v2896 = vpack.c.bf16 %v2864, %v2864
            %v2897 = vpack.c.bf16 %v2865, %v2865
            %v2898 = vpack.c.bf16 %v2866, %v2866
            %v2899 = vpack.c.bf16 %v2867, %v2867
            %v2900 = vpack.c.bf16 %v2868, %v2868
            %v2901 = vpack.c.bf16 %v2869, %v2869
            %v2902 = vpack.c.bf16 %v2870, %v2870
            %v2903 = vpack.c.bf16 %v2871, %v2871
            %v2904 = vpack.c.bf16 %v2872, %v2872
            %v2905 = vpack.c.bf16 %v2873, %v2873
            %v2906 = vpack.c.bf16 %v2874, %v2874
            %v2907 = vpack.c.bf16 %v2875, %v2875
            %v2908 = vpack.c.bf16 %v2876, %v2876
            %v2909 = vpack.c.bf16 %v2877, %v2877
            %v2910 = vpack.c.bf16 %v2878, %v2878
            %vm2911 = vcmask 1043968
            %2912 = vst.msk [vmem:[%s442] sm:$0xf] %vm2911, %v2879
            %2913 = vst.msk [vmem:[%s442 + $0x4] sm:$0xf] %vm2911, %v2880
            %2914 = vst.msk [vmem:[%s442 + $0x8] sm:$0xf] %vm2911, %v2881
            %2915 = vst.msk [vmem:[%s442 + $0xc] sm:$0xf] %vm2911, %v2882
            %2916 = vst.msk [vmem:[%s442 + $0x10] sm:$0xf] %vm2911, %v2883
            %2917 = vst.msk [vmem:[%s442 + $0x14] sm:$0xf] %vm2911, %v2884
            %2918 = vst.msk [vmem:[%s442 + $0x18] sm:$0xf] %vm2911, %v2885
            %2919 = vst.msk [vmem:[%s442 + $0x1c] sm:$0xf] %vm2911, %v2886
            %2920 = vst.msk [vmem:[%s442 + $0x20] sm:$0xf] %vm2911, %v2887
            %2921 = vst.msk [vmem:[%s442 + $0x24] sm:$0xf] %vm2911, %v2888
            %2922 = vst.msk [vmem:[%s442 + $0x28] sm:$0xf] %vm2911, %v2889
            %2923 = vst.msk [vmem:[%s442 + $0x2c] sm:$0xf] %vm2911, %v2890
            %2924 = vst.msk [vmem:[%s442 + $0x30] sm:$0xf] %vm2911, %v2891
            %2925 = vst.msk [vmem:[%s442 + $0x34] sm:$0xf] %vm2911, %v2892
            %2926 = vst.msk [vmem:[%s442 + $0x38] sm:$0xf] %vm2911, %v2893
            %2927 = vst.msk [vmem:[%s442 + $0x3c] sm:$0xf] %vm2911, %v2894
            %2928 = vst.msk [vmem:[%s442 + $0x40] sm:$0xf] %vm2911, %v2895
            %2929 = vst.msk [vmem:[%s442 + $0x44] sm:$0xf] %vm2911, %v2896
            %2930 = vst.msk [vmem:[%s442 + $0x48] sm:$0xf] %vm2911, %v2897
            %2931 = vst.msk [vmem:[%s442 + $0x4c] sm:$0xf] %vm2911, %v2898
            %2932 = vst.msk [vmem:[%s442 + $0x50] sm:$0xf] %vm2911, %v2899
            %2933 = vst.msk [vmem:[%s442 + $0x54] sm:$0xf] %vm2911, %v2900
            %2934 = vst.msk [vmem:[%s442 + $0x58] sm:$0xf] %vm2911, %v2901
            %2935 = vst.msk [vmem:[%s442 + $0x5c] sm:$0xf] %vm2911, %v2902
            %2936 = vst.msk [vmem:[%s442 + $0x60] sm:$0xf] %vm2911, %v2903
            %2937 = vst.msk [vmem:[%s442 + $0x64] sm:$0xf] %vm2911, %v2904
            %2938 = vst.msk [vmem:[%s442 + $0x68] sm:$0xf] %vm2911, %v2905
            %2939 = vst.msk [vmem:[%s442 + $0x6c] sm:$0xf] %vm2911, %v2906
            %2940 = vst.msk [vmem:[%s442 + $0x70] sm:$0xf] %vm2911, %v2907
            %2941 = vst.msk [vmem:[%s442 + $0x74] sm:$0xf] %vm2911, %v2908
            %2942 = vst.msk [vmem:[%s442 + $0x78] sm:$0xf] %vm2911, %v2909
            %2943 = vst.msk [vmem:[%s442 + $0x7c] sm:$0xf] %vm2911, %v2910
          $region68: #{tpu_custom_call.1} parent=59 // pred_fallthru
            _
          %p2944 = scmp.ge.s32.totalorder %s33, 4
          // Predicated region
          $region69: #{tpu_custom_call.1} parent=59 // pred_check
            %p2945 = pneg %p2944
          $region70: #{tpu_custom_call.1} parent=59 // pred_check_branch
            %2947 = sbr.rel (%p2945) target = $region72
          $region71: #{tpu_custom_call.1} parent=59 // pred_region
            %v2948 = vpack.c.bf16 %v1106, %v1106
            %v2949 = vpack.c.bf16 %v1107, %v1107
            %v2950 = vpack.c.bf16 %v1108, %v1108
            %v2951 = vpack.c.bf16 %v1109, %v1109
            %v2952 = vpack.c.bf16 %v1110, %v1110
            %v2953 = vpack.c.bf16 %v1111, %v1111
            %v2954 = vpack.c.bf16 %v1112, %v1112
            %v2955 = vpack.c.bf16 %v1113, %v1113
            %v2956 = vpack.c.bf16 %v1114, %v1114
            %v2957 = vpack.c.bf16 %v1115, %v1115
            %v2958 = vpack.c.bf16 %v1116, %v1116
            %v2959 = vpack.c.bf16 %v1117, %v1117
            %v2960 = vpack.c.bf16 %v1118, %v1118
            %v2961 = vpack.c.bf16 %v1119, %v1119
            %v2962 = vpack.c.bf16 %v1120, %v1120
            %v2963 = vpack.c.bf16 %v1121, %v1121
            %v2964 = vpack.c.bf16 %v1122, %v1122
            %v2965 = vpack.c.bf16 %v1123, %v1123
            %v2966 = vpack.c.bf16 %v1124, %v1124
            %v2967 = vpack.c.bf16 %v1125, %v1125
            %v2968 = vpack.c.bf16 %v1126, %v1126
            %v2969 = vpack.c.bf16 %v1127, %v1127
            %v2970 = vpack.c.bf16 %v1128, %v1128
            %v2971 = vpack.c.bf16 %v1129, %v1129
            %v2972 = vpack.c.bf16 %v1130, %v1130
            %v2973 = vpack.c.bf16 %v1131, %v1131
            %v2974 = vpack.c.bf16 %v1132, %v1132
            %v2975 = vpack.c.bf16 %v1133, %v1133
            %v2976 = vpack.c.bf16 %v1134, %v1134
            %v2977 = vpack.c.bf16 %v1135, %v1135
            %v2978 = vpack.c.bf16 %v1136, %v1136
            %v2979 = vpack.c.bf16 %v1137, %v1137
            %2980 = vst [vmem:[%s442] sm:$0xf] %v2948
            %2981 = vst [vmem:[%s442 + $0x4] sm:$0xf] %v2949
            %2982 = vst [vmem:[%s442 + $0x8] sm:$0xf] %v2950
            %2983 = vst [vmem:[%s442 + $0xc] sm:$0xf] %v2951
            %2984 = vst [vmem:[%s442 + $0x10] sm:$0xf] %v2952
            %2985 = vst [vmem:[%s442 + $0x14] sm:$0xf] %v2953
            %2986 = vst [vmem:[%s442 + $0x18] sm:$0xf] %v2954
            %2987 = vst [vmem:[%s442 + $0x1c] sm:$0xf] %v2955
            %2988 = vst [vmem:[%s442 + $0x20] sm:$0xf] %v2956
            %2989 = vst [vmem:[%s442 + $0x24] sm:$0xf] %v2957
            %2990 = vst [vmem:[%s442 + $0x28] sm:$0xf] %v2958
            %2991 = vst [vmem:[%s442 + $0x2c] sm:$0xf] %v2959
            %2992 = vst [vmem:[%s442 + $0x30] sm:$0xf] %v2960
            %2993 = vst [vmem:[%s442 + $0x34] sm:$0xf] %v2961
            %2994 = vst [vmem:[%s442 + $0x38] sm:$0xf] %v2962
            %2995 = vst [vmem:[%s442 + $0x3c] sm:$0xf] %v2963
            %2996 = vst [vmem:[%s442 + $0x40] sm:$0xf] %v2964
            %2997 = vst [vmem:[%s442 + $0x44] sm:$0xf] %v2965
            %2998 = vst [vmem:[%s442 + $0x48] sm:$0xf] %v2966
            %2999 = vst [vmem:[%s442 + $0x4c] sm:$0xf] %v2967
            %3000 = vst [vmem:[%s442 + $0x50] sm:$0xf] %v2968
            %3001 = vst [vmem:[%s442 + $0x54] sm:$0xf] %v2969
            %3002 = vst [vmem:[%s442 + $0x58] sm:$0xf] %v2970
            %3003 = vst [vmem:[%s442 + $0x5c] sm:$0xf] %v2971
            %3004 = vst [vmem:[%s442 + $0x60] sm:$0xf] %v2972
            %3005 = vst [vmem:[%s442 + $0x64] sm:$0xf] %v2973
            %3006 = vst [vmem:[%s442 + $0x68] sm:$0xf] %v2974
            %3007 = vst [vmem:[%s442 + $0x6c] sm:$0xf] %v2975
            %3008 = vst [vmem:[%s442 + $0x70] sm:$0xf] %v2976
            %3009 = vst [vmem:[%s442 + $0x74] sm:$0xf] %v2977
            %3010 = vst [vmem:[%s442 + $0x78] sm:$0xf] %v2978
            %3011 = vst [vmem:[%s442 + $0x7c] sm:$0xf] %v2979
          $region72: #{tpu_custom_call.1} parent=59 // pred_fallthru
            _
        $region60: #{tpu_custom_call.1} parent=35 // pred_fallthru
          _
        %s3012 = sand.u32 %s212, 1
        %s3013 = scalar_lea.sflag [#allocation5], %s3012
        %s3014 = sand.u32 %s212, 1
        %s3015 = smul.addr %s3014, 128
        %s3016 = scalar_lea.vmem [#allocation11], %s3015
        // Predicated region
        $region73: #{tpu_custom_call.1} parent=35 // pred_check
          %p3017 = pneg %p222
        $region74: #{tpu_custom_call.1} parent=35 // pred_check_branch
          %3019 = sbr.rel (%p3017) target = $region76
        $region75: #{tpu_custom_call.1} parent=35 // pred_region
          %s3020 = smul.u32 32, %s32
          %3022 = vsyncadd %s3013, 0
          %s3023 = smul.addr %s3020, 6
          %s3024 = sadd.s32 %s33, %s3023
          %s3025 = smul.addr %s3024, 4
          %s3026 = scalar_lea.hbm %s4, %s3025
          %s3027 = sshll.u32 %s3016, 4
          %s3028 = int_to_ptr.vmem [resolvable:$true] %s3027
          %s3029 = sshll.u32 %s3026, 4
          %s3030 = int_to_ptr.hbm [resolvable:$true] %s3029
          %3035 = dma.vmem_to_hbm [thread:$0]  %s3028, 2048, %s3030, %s3013, 64, 384, 4
        $region76: #{tpu_custom_call.1} parent=35 // pred_fallthru
          _
      $region36: #{tpu_custom_call.1} parent=5 // pred_fallthru
        _
      %p3036 = scmp.le.s32.totalorder 2, %s22
      // Predicated region
      $region77: #{tpu_custom_call.1} parent=5 // pred_check
        %p3037 = pneg %p3036
      $region78: #{tpu_custom_call.1} parent=5 // pred_check_branch
        %3039 = sbr.rel (%p3037) target = $region80
      $region79: #{tpu_custom_call.1} parent=5 // pred_region
        %s3040 = ssub.s32 %s22, 2
        // Predicated region
        $region81: #{tpu_custom_call.1} parent=79 // pred_check
          %p3041 = pneg %p228
        $region82: #{tpu_custom_call.1} parent=79 // pred_check_branch
          %3043 = sbr.rel (%p3041) target = $region84
        $region83: #{tpu_custom_call.1} parent=79 // pred_region
          %s3044 = sand.u32 %s213, 1
          %s3045 = scalar_lea.sflag [#allocation5], %s3044
          %s3046 = sand.u32 %s213, 1
          %s3047 = smul.addr %s3046, 128
          %s3048 = scalar_lea.vmem [#allocation11], %s3047
          %3050 = dma.done %s3045, 2048
        $region84: #{tpu_custom_call.1} parent=79 // pred_fallthru
          _
      $region80: #{tpu_custom_call.1} parent=5 // pred_fallthru
        _
    $region6: #{tpu_custom_call.1} parent=1 // loop_footer
      %s26 = sadd.s32 1, %s22
    $region7: #{tpu_custom_call.1} parent=1 // loop_footer_branch
      %21 = sbr.rel target = $region3
    $region8: #{tpu_custom_call.1} parent=1 // loop_exit
      _
    %3051 = vsyncpa [#allocation4], 1
    %s3052 = scalar_lea.sflag [#allocation4], 1
    %3053 = vsyncpa %s3052, 1
    %3054 = vsyncpa [#allocation7], 1
    %s3055 = scalar_lea.sflag [#allocation7], 1
    %3056 = vsyncpa %s3055, 1
    %3057 = vsyncpa [#allocation10], 1
    %s3058 = scalar_lea.sflag [#allocation10], 1
    %3059 = vsyncpa %s3058, 1
    %3060 = vsyncpa [#allocation5], 1
    %s3061 = scalar_lea.sflag [#allocation5], 1
    %3062 = vsyncpa %s3061, 1

</llo_original>
